<compile_context>
chip_gen: v7x
topology: tpu7x:2x2x1
jax: 0.10.0
libtpu: 0.0.40
codegen_flags: <defaults>
</compile_context>

<pallas_src>
import functools

import jax
import jax.numpy as jnp
from jax import lax
from jax.experimental import pallas as pl
from jax.experimental.pallas import tpu as pltpu


def _round_up(n, m):
    return ((n + m - 1) // m) * m


# -----------------------------------------------------------------------------
# Kernel 1: strictly sequential LSTM recurrence over a chunk of timesteps.
#   gx_ref   : (chunk, B, 4H)  precomputed x_t @ W_ih^T + (b_ih + b_hh)
#   h0/c0    : (B, H)          initial state
#   whh_ref  : (H, 4H)         W_hh^T
#   hseq_ref : (chunk, B, H)   per-step hidden states (consumed by the FC kernel)
#   hT/cT    : (B, H)          final state (written only on the last chunk)
#   h_sc/c_sc: VMEM scratch carrying state across chunk boundaries
# -----------------------------------------------------------------------------
def _lstm_recurrence_kernel(gx_ref, h0_ref, c0_ref, whh_ref,
                            hseq_ref, hT_ref, cT_ref,
                            h_sc, c_sc, *, seq_len, chunk, hidden, unroll):
    ci = pl.program_id(0)

    @pl.when(ci == 0)
    def _():
        h_sc[...] = h0_ref[...]
        c_sc[...] = c0_ref[...]

    H = hidden
    whh = whh_ref[...]                        # loaded once per chunk
    base = ci * chunk
    needs_mask = (seq_len % chunk) != 0       # static Python bool (tail chunk only)

    def step(t, carry):
        h, c = carry
        # Serial critical path per step: one (B,H)x(H,4H) MXU op + gate math.
        g = gx_ref[t] + jnp.dot(h, whh, preferred_element_type=jnp.float32)
        i_g = jax.nn.sigmoid(g[:, 0 * H:1 * H])
        f_g = jax.nn.sigmoid(g[:, 1 * H:2 * H])
        g_g = jnp.tanh(g[:, 2 * H:3 * H])
        o_g = jax.nn.sigmoid(g[:, 3 * H:4 * H])
        c_new = f_g * c + i_g * g_g
        h_new = o_g * jnp.tanh(c_new)
        hseq_ref[t] = h_new
        if needs_mask:                        # traced only when T % chunk != 0
            valid = (base + t) < seq_len
            h_new = jnp.where(valid, h_new, h)
            c_new = jnp.where(valid, c_new, c)
        return h_new, c_new

    h, c = lax.fori_loop(0, chunk, step, (h_sc[...], c_sc[...]), unroll=unroll)
    h_sc[...] = h
    c_sc[...] = c

    @pl.when(ci == pl.num_programs(0) - 1)
    def _():
        hT_ref[...] = h
        cT_ref[...] = c


# -----------------------------------------------------------------------------
# Kernel 2: batched FC + log_softmax over (rows = T*B).  Output is lane-dense:
# O is padded to a multiple of 128; padded logit columns carry a -1e30 bias so
# they vanish from the softmax; the wrapper slices them off.
# -----------------------------------------------------------------------------
def _fc_log_softmax_kernel(h_ref, wfc_ref, bfc_ref, out_ref):
    y = (jnp.dot(h_ref[...], wfc_ref[...], preferred_element_type=jnp.float32)
         + bfc_ref[...])
    m = jnp.max(y, axis=-1, keepdims=True)
    lse = m + jnp.log(jnp.sum(jnp.exp(y - m), axis=-1, keepdims=True))
    out_ref[...] = y - lse


def actor_network_forward(x, hidden, params, *, time_chunk=128, row_block=512):
    """x: (B, T, in_size) f32; hidden = (h0, c0) each (1, B, H) f32.

    Returns (log_probs (B, T, out_size), (hT, cT)) matching the PyTorch module.
    """
    W_ih, W_hh, b_ih, b_hh, W_fc, b_fc = params
    B, T, I = x.shape
    H = W_hh.shape[1]
    O = W_fc.shape[0]
    f32 = jnp.float32

    h0 = hidden[0][0].astype(f32)                                  # (B, H)
    c0 = hidden[1][0].astype(f32)                                  # (B, H)

    # ---- Stage 1 (XLA): hoisted input projection — one big GEMM over all timesteps.
    chunk = min(T, time_chunk)
    nchunks = pl.cdiv(T, chunk)
    T_pad = nchunks * chunk

    x_tbi = jnp.transpose(x.astype(f32), (1, 0, 2))                # (T, B, I)
    if T_pad != T:
        x_tbi = jnp.pad(x_tbi, ((0, T_pad - T), (0, 0), (0, 0)))
    bias_g = (b_ih + b_hh).astype(f32)                             # (4H,)
    gx = (jnp.dot(x_tbi.reshape(T_pad * B, I), jnp.transpose(W_ih).astype(f32),
                  precision=jax.lax.Precision.HIGHEST)
          + bias_g[None, :]).reshape(T_pad, B, 4 * H)              # (T_pad, B, 4H)

    whh_t = jnp.transpose(W_hh).astype(f32)                        # (H, 4H)

    # ---- Stage 2 (Pallas): sequential recurrence; grid = time chunks (arbitrary).
    unroll = chunk <= 32
    rec_kernel = functools.partial(
        _lstm_recurrence_kernel, seq_len=T, chunk=chunk, hidden=H, unroll=unroll)

    hseq, hT, cT = pl.pallas_call(
        rec_kernel,
        out_shape=(
            jax.ShapeDtypeStruct((T_pad, B, H), f32),
            jax.ShapeDtypeStruct((B, H), f32),
            jax.ShapeDtypeStruct((B, H), f32),
        ),
        grid_spec=pltpu.PrefetchScalarGridSpec(
            num_scalar_prefetch=0,
            grid=(nchunks,),
            in_specs=[
                pl.BlockSpec((chunk, B, 4 * H), lambda c: (c, 0, 0)),  # gates_x chunk
                pl.BlockSpec((B, H), lambda c: (0, 0)),                # h0
                pl.BlockSpec((B, H), lambda c: (0, 0)),                # c0
                pl.BlockSpec((H, 4 * H), lambda c: (0, 0)),            # W_hh^T
            ],
            out_specs=[
                pl.BlockSpec((chunk, B, H), lambda c: (c, 0, 0)),      # h_t sequence
                pl.BlockSpec((B, H), lambda c: (0, 0)),                # h_T
                pl.BlockSpec((B, H), lambda c: (0, 0)),                # c_T
            ],
            scratch_shapes=[
                pltpu.VMEM((B, H), f32),   # h carried across chunks
                pltpu.VMEM((B, H), f32),   # c carried across chunks
            ],
        ),
        compiler_params=pltpu.CompilerParams(
            dimension_semantics=("arbitrary",)),   # recurrence is sequential in time
    )(gx, h0, c0, whh_t)

    # ---- Stage 3 (Pallas): batched FC + log_softmax, lane-dense output.
    N = T * B
    O_pad = _round_up(max(O, 1), 128)
    if N <= row_block:
        RB = _round_up(N, 8)
        N_pad = RB
    else:
        RB = row_block
        N_pad = _round_up(N, RB)

    h2 = hseq[:T].reshape(N, H)
    if N_pad != N:
        h2 = jnp.pad(h2, ((0, N_pad - N), (0, 0)))

    wfc_pad = jnp.zeros((H, O_pad), f32).at[:, :O].set(jnp.transpose(W_fc).astype(f32))
    bfc_pad = jnp.full((1, O_pad), -1e30, f32).at[0, :O].set(b_fc.astype(f32))

    logp_flat = pl.pallas_call(
        _fc_log_softmax_kernel,
        out_shape=jax.ShapeDtypeStruct((N_pad, O_pad), f32),
        grid_spec=pltpu.PrefetchScalarGridSpec(
            num_scalar_prefetch=0,
            grid=(N_pad // RB,),
            in_specs=[
                pl.BlockSpec((RB, H), lambda r: (r, 0)),
                pl.BlockSpec((H, O_pad), lambda r: (0, 0)),
                pl.BlockSpec((1, O_pad), lambda r: (0, 0)),
            ],
            out_specs=pl.BlockSpec((RB, O_pad), lambda r: (r, 0)),
        ),
        compiler_params=pltpu.CompilerParams(
            dimension_semantics=("parallel",)),
    )(h2, wfc_pad, bfc_pad)

    logp = logp_flat[:N, :O].reshape(T, B, O).transpose(1, 0, 2)   # (B, T, O)
    return logp, (hT[None], cT[None])


def _reference_forward(x, hidden, params):
    """Pure-JAX reference (same math as torch.nn.LSTM + Linear + log_softmax)."""
    W_ih, W_hh, b_ih, b_hh, W_fc, b_fc = params
    h, c = hidden[0][0], hidden[1][0]
    H = h.shape[-1]
    outs = []
    for t in range(x.shape[1]):
        xt = x[:, t, :]
        gates = xt @ W_ih.T + b_ih + h @ W_hh.T + b_hh
        i = jax.nn.sigmoid(gates[:, 0 * H:1 * H])
        f = jax.nn.sigmoid(gates[:, 1 * H:2 * H])
        g = jnp.tanh(gates[:, 2 * H:3 * H])
        o = jax.nn.sigmoid(gates[:, 3 * H:4 * H])
        c = f * c + i * g
        h = o * jnp.tanh(c)
        y = h @ W_fc.T + b_fc
        outs.append(jax.nn.log_softmax(y, axis=-1))
    return jnp.stack(outs, axis=1), (h[None], c[None])


def init_params(key, in_size, hidden_size, out_size):
    """Deterministic init matching PyTorch shapes (uniform(-1/sqrt(H), 1/sqrt(H)))."""
    ks = jax.random.split(key, 6)
    s = 1.0 / jnp.sqrt(hidden_size)
    W_ih = jax.random.uniform(ks[0], (4 * hidden_size, in_size), jnp.float32, -s, s)
    W_hh = jax.random.uniform(ks[1], (4 * hidden_size, hidden_size), jnp.float32, -s, s)
    b_ih = jax.random.uniform(ks[2], (4 * hidden_size,), jnp.float32, -s, s)
    b_hh = jax.random.uniform(ks[3], (4 * hidden_size,), jnp.float32, -s, s)
    W_fc = jax.random.uniform(ks[4], (out_size, hidden_size), jnp.float32, -s, s)
    b_fc = jax.random.uniform(ks[5], (out_size,), jnp.float32, -s, s)
    return (W_ih, W_hh, b_ih, b_hh, W_fc, b_fc)


if __name__ == "__main__":
    B, T, IN, HID, OUT = 2, 8, 4, 32, 6

    key = jax.random.PRNGKey(0)
    k_x, k_h, k_c, k_p = jax.random.split(key, 4)
    x = jax.random.normal(k_x, (B, T, IN), jnp.float32)
    h0 = jax.random.normal(k_h, (1, B, HID), jnp.float32)
    c0 = jax.random.normal(k_c, (1, B, HID), jnp.float32)
    params = init_params(k_p, IN, HID, OUT)

    fwd = jax.jit(actor_network_forward)
    logp, (hT, cT) = fwd(x, (h0, c0), params)
    jax.block_until_ready((logp, hT, cT))

    # Correctness check against a plain-JAX reference of the PyTorch semantics.
    logp_ref, (hT_ref, cT_ref) = _reference_forward(x, (h0, c0), params)
    assert logp.shape == (B, T, OUT)
    assert hT.shape == (1, B, HID) and cT.shape == (1, B, HID)
    assert jnp.allclose(logp, logp_ref, atol=1e-4, rtol=1e-4)
    assert jnp.allclose(hT, hT_ref, atol=1e-4, rtol=1e-4)
    assert jnp.allclose(cT, cT_ref, atol=1e-4, rtol=1e-4)

    print("KERNEL_OK")
</pallas_src>

<mosaic_0001>
module attributes {stable_mosaic.version = 11 : i64} {
  func.func @_lstm_recurrence_kernel(%arg0: i32, %arg1: memref<8x2x128xf32, #tpu.memory_space<vmem>>, %arg2: memref<2x32xf32, #tpu.memory_space<vmem>>, %arg3: memref<2x32xf32, #tpu.memory_space<vmem>>, %arg4: memref<32x128xf32, #tpu.memory_space<vmem>>, %arg5: memref<8x2x32xf32, #tpu.memory_space<vmem>>, %arg6: memref<2x32xf32, #tpu.memory_space<vmem>>, %arg7: memref<2x32xf32, #tpu.memory_space<vmem>>, %arg8: memref<2x32xf32, #tpu.memory_space<vmem>>, %arg9: memref<2x32xf32, #tpu.memory_space<vmem>>) attributes {dimension_semantics = [#tpu.dimension_semantics<arbitrary>], iteration_bounds = array<i64: 1>, scalar_prefetch = 0 : i64, scratch_operands = 2 : i64, tpu.core_type = #tpu.core_type<tc>, window_params = [{transform_indices = @transform_0, window_bounds = array<i64: 8, 2, 128>}, {pipeline_mode = #tpu.pipeline_mode<synchronous>, transform_indices = @transform_1, window_bounds = array<i64: 2, 32>}, {pipeline_mode = #tpu.pipeline_mode<synchronous>, transform_indices = @transform_2, window_bounds = array<i64: 2, 32>}, {pipeline_mode = #tpu.pipeline_mode<synchronous>, transform_indices = @transform_3, window_bounds = array<i64: 32, 128>}, {transform_indices = @transform_4, window_bounds = array<i64: 8, 2, 32>}, {pipeline_mode = #tpu.pipeline_mode<synchronous>, transform_indices = @transform_5, window_bounds = array<i64: 2, 32>}, {pipeline_mode = #tpu.pipeline_mode<synchronous>, transform_indices = @transform_6, window_bounds = array<i64: 2, 32>}]} {
    %c0_i32 = arith.constant 0 : i32
    %0 = arith.cmpi eq, %arg0, %c0_i32 : i32
    %1 = arith.extui %0 : i1 to i32
    %c0_i32_0 = arith.constant 0 : i32
    %2 = arith.cmpi ne, %1, %c0_i32_0 : i32
    scf.if %2 {
      %c0_76 = arith.constant 0 : index
      %c0_77 = arith.constant 0 : index
      %283 = vector.load %arg2[%c0_76, %c0_77] : memref<2x32xf32, #tpu.memory_space<vmem>>, vector<2x32xf32>
      %c0_78 = arith.constant 0 : index
      %c0_79 = arith.constant 0 : index
      %284 = vector.load %arg8[%c0_78, %c0_79] : memref<2x32xf32, #tpu.memory_space<vmem>>, vector<2x32xf32>
      tpu.vector_store %arg8[%c0_78, %c0_79], %283 {strides = array<i32>} : memref<2x32xf32, #tpu.memory_space<vmem>>, vector<2x32xf32>,
      %c0_80 = arith.constant 0 : index
      %c0_81 = arith.constant 0 : index
      %285 = vector.load %arg3[%c0_80, %c0_81] : memref<2x32xf32, #tpu.memory_space<vmem>>, vector<2x32xf32>
      %c0_82 = arith.constant 0 : index
      %c0_83 = arith.constant 0 : index
      %286 = vector.load %arg9[%c0_82, %c0_83] : memref<2x32xf32, #tpu.memory_space<vmem>>, vector<2x32xf32>
      tpu.vector_store %arg9[%c0_82, %c0_83], %285 {strides = array<i32>} : memref<2x32xf32, #tpu.memory_space<vmem>>, vector<2x32xf32>,
    } else {
    }
    %c0 = arith.constant 0 : index
    %c0_1 = arith.constant 0 : index
    %3 = vector.load %arg4[%c0, %c0_1] : memref<32x128xf32, #tpu.memory_space<vmem>>, vector<32x128xf32>
    %c0_2 = arith.constant 0 : index
    %c0_3 = arith.constant 0 : index
    %4 = vector.load %arg8[%c0_2, %c0_3] : memref<2x32xf32, #tpu.memory_space<vmem>>, vector<2x32xf32>
    %c0_4 = arith.constant 0 : index
    %c0_5 = arith.constant 0 : index
    %5 = vector.load %arg9[%c0_4, %c0_5] : memref<2x32xf32, #tpu.memory_space<vmem>>, vector<2x32xf32>
    %c0_i32_6 = arith.constant 0 : i32
    %6 = arith.index_cast %c0_i32_6 : i32 to index
    %c0_7 = arith.constant 0 : index
    %c0_8 = arith.constant 0 : index
    %7 = vector.load %arg1[%6, %c0_7, %c0_8] : memref<8x2x128xf32, #tpu.memory_space<vmem>>, vector<1x2x128xf32>
    %8 = vector.shape_cast %7 : vector<1x2x128xf32> to vector<2x128xf32>
    %cst = arith.constant dense<0.000000e+00> : vector<2x128xf32>
    %9 = tpu.matmul %4, %3, %cst {dimension_numbers = #tpu.dot_dimension_numbers<[1], [0], [0], [1], [0, 0, 1, 1], [], []>} : vector<2x32xf32>, vector<32x128xf32>, vector<2x128xf32> -> vector<2x128xf32>
    %10 = arith.addf %8, %9 : vector<2x128xf32>
    %11 = vector.extract_strided_slice %10 {offsets = [0, 0], sizes = [2, 32], strides = [1, 1]} : vector<2x128xf32> to vector<2x32xf32>
    %12 = arith.negf %11 : vector<2x32xf32>
    %13 = math.exp %12 : vector<2x32xf32>
    %cst_9 = arith.constant 1.000000e+00 : f32
    %14 = vector.broadcast %cst_9 : f32 to vector<2x32xf32>
    %15 = arith.addf %14, %13 : vector<2x32xf32>
    %16 = arith.divf %14, %15 : vector<2x32xf32>
    %17 = vector.extract_strided_slice %10 {offsets = [0, 32], sizes = [2, 32], strides = [1, 1]} : vector<2x128xf32> to vector<2x32xf32>
    %18 = arith.negf %17 : vector<2x32xf32>
    %19 = math.exp %18 : vector<2x32xf32>
    %cst_10 = arith.constant 1.000000e+00 : f32
    %20 = vector.broadcast %cst_10 : f32 to vector<2x32xf32>
    %21 = arith.addf %20, %19 : vector<2x32xf32>
    %22 = arith.divf %20, %21 : vector<2x32xf32>
    %23 = vector.extract_strided_slice %10 {offsets = [0, 64], sizes = [2, 32], strides = [1, 1]} : vector<2x128xf32> to vector<2x32xf32>
    %24 = math.tanh %23 : vector<2x32xf32>
    %25 = vector.extract_strided_slice %10 {offsets = [0, 96], sizes = [2, 32], strides = [1, 1]} : vector<2x128xf32> to vector<2x32xf32>
    %26 = arith.negf %25 : vector<2x32xf32>
    %27 = math.exp %26 : vector<2x32xf32>
    %cst_11 = arith.constant 1.000000e+00 : f32
    %28 = vector.broadcast %cst_11 : f32 to vector<2x32xf32>
    %29 = arith.addf %28, %27 : vector<2x32xf32>
    %30 = arith.divf %28, %29 : vector<2x32xf32>
    %31 = arith.mulf %22, %5 : vector<2x32xf32>
    %32 = arith.mulf %16, %24 : vector<2x32xf32>
    %33 = arith.addf %31, %32 : vector<2x32xf32>
    %34 = math.tanh %33 : vector<2x32xf32>
    %35 = arith.mulf %30, %34 : vector<2x32xf32>
    %36 = arith.index_cast %c0_i32_6 : i32 to index
    %c0_12 = arith.constant 0 : index
    %c0_13 = arith.constant 0 : index
    %37 = vector.load %arg5[%36, %c0_12, %c0_13] : memref<8x2x32xf32, #tpu.memory_space<vmem>>, vector<1x2x32xf32>
    %38 = vector.shape_cast %37 : vector<1x2x32xf32> to vector<2x32xf32>
    %39 = vector.shape_cast %35 : vector<2x32xf32> to vector<1x2x32xf32>
    tpu.vector_store %arg5[%36, %c0_12, %c0_13], %39 {strides = array<i32>} : memref<8x2x32xf32, #tpu.memory_space<vmem>>, vector<1x2x32xf32>,
    %c1_i32 = arith.constant 1 : i32
    %40 = arith.index_cast %c1_i32 : i32 to index
    %c0_14 = arith.constant 0 : index
    %c0_15 = arith.constant 0 : index
    %41 = vector.load %arg1[%40, %c0_14, %c0_15] : memref<8x2x128xf32, #tpu.memory_space<vmem>>, vector<1x2x128xf32>
    %42 = vector.shape_cast %41 : vector<1x2x128xf32> to vector<2x128xf32>
    %cst_16 = arith.constant dense<0.000000e+00> : vector<2x128xf32>
    %43 = tpu.matmul %35, %3, %cst_16 {dimension_numbers = #tpu.dot_dimension_numbers<[1], [0], [0], [1], [0, 0, 1, 1], [], []>} : vector<2x32xf32>, vector<32x128xf32>, vector<2x128xf32> -> vector<2x128xf32>
    %44 = arith.addf %42, %43 : vector<2x128xf32>
    %45 = vector.extract_strided_slice %44 {offsets = [0, 0], sizes = [2, 32], strides = [1, 1]} : vector<2x128xf32> to vector<2x32xf32>
    %46 = arith.negf %45 : vector<2x32xf32>
    %47 = math.exp %46 : vector<2x32xf32>
    %cst_17 = arith.constant 1.000000e+00 : f32
    %48 = vector.broadcast %cst_17 : f32 to vector<2x32xf32>
    %49 = arith.addf %48, %47 : vector<2x32xf32>
    %50 = arith.divf %48, %49 : vector<2x32xf32>
    %51 = vector.extract_strided_slice %44 {offsets = [0, 32], sizes = [2, 32], strides = [1, 1]} : vector<2x128xf32> to vector<2x32xf32>
    %52 = arith.negf %51 : vector<2x32xf32>
    %53 = math.exp %52 : vector<2x32xf32>
    %cst_18 = arith.constant 1.000000e+00 : f32
    %54 = vector.broadcast %cst_18 : f32 to vector<2x32xf32>
    %55 = arith.addf %54, %53 : vector<2x32xf32>
    %56 = arith.divf %54, %55 : vector<2x32xf32>
    %57 = vector.extract_strided_slice %44 {offsets = [0, 64], sizes = [2, 32], strides = [1, 1]} : vector<2x128xf32> to vector<2x32xf32>
    %58 = math.tanh %57 : vector<2x32xf32>
    %59 = vector.extract_strided_slice %44 {offsets = [0, 96], sizes = [2, 32], strides = [1, 1]} : vector<2x128xf32> to vector<2x32xf32>
    %60 = arith.negf %59 : vector<2x32xf32>
    %61 = math.exp %60 : vector<2x32xf32>
    %cst_19 = arith.constant 1.000000e+00 : f32
    %62 = vector.broadcast %cst_19 : f32 to vector<2x32xf32>
    %63 = arith.addf %62, %61 : vector<2x32xf32>
    %64 = arith.divf %62, %63 : vector<2x32xf32>
    %65 = arith.mulf %56, %33 : vector<2x32xf32>
    %66 = arith.mulf %50, %58 : vector<2x32xf32>
    %67 = arith.addf %65, %66 : vector<2x32xf32>
    %68 = math.tanh %67 : vector<2x32xf32>
    %69 = arith.mulf %64, %68 : vector<2x32xf32>
    %70 = arith.index_cast %c1_i32 : i32 to index
    %c0_20 = arith.constant 0 : index
    %c0_21 = arith.constant 0 : index
    %71 = vector.load %arg5[%70, %c0_20, %c0_21] : memref<8x2x32xf32, #tpu.memory_space<vmem>>, vector<1x2x32xf32>
    %72 = vector.shape_cast %71 : vector<1x2x32xf32> to vector<2x32xf32>
    %73 = vector.shape_cast %69 : vector<2x32xf32> to vector<1x2x32xf32>
    tpu.vector_store %arg5[%70, %c0_20, %c0_21], %73 {strides = array<i32>} : memref<8x2x32xf32, #tpu.memory_space<vmem>>, vector<1x2x32xf32>,
    %c2_i32 = arith.constant 2 : i32
    %74 = arith.index_cast %c2_i32 : i32 to index
    %c0_22 = arith.constant 0 : index
    %c0_23 = arith.constant 0 : index
    %75 = vector.load %arg1[%74, %c0_22, %c0_23] : memref<8x2x128xf32, #tpu.memory_space<vmem>>, vector<1x2x128xf32>
    %76 = vector.shape_cast %75 : vector<1x2x128xf32> to vector<2x128xf32>
    %cst_24 = arith.constant dense<0.000000e+00> : vector<2x128xf32>
    %77 = tpu.matmul %69, %3, %cst_24 {dimension_numbers = #tpu.dot_dimension_numbers<[1], [0], [0], [1], [0, 0, 1, 1], [], []>} : vector<2x32xf32>, vector<32x128xf32>, vector<2x128xf32> -> vector<2x128xf32>
    %78 = arith.addf %76, %77 : vector<2x128xf32>
    %79 = vector.extract_strided_slice %78 {offsets = [0, 0], sizes = [2, 32], strides = [1, 1]} : vector<2x128xf32> to vector<2x32xf32>
    %80 = arith.negf %79 : vector<2x32xf32>
    %81 = math.exp %80 : vector<2x32xf32>
    %cst_25 = arith.constant 1.000000e+00 : f32
    %82 = vector.broadcast %cst_25 : f32 to vector<2x32xf32>
    %83 = arith.addf %82, %81 : vector<2x32xf32>
    %84 = arith.divf %82, %83 : vector<2x32xf32>
    %85 = vector.extract_strided_slice %78 {offsets = [0, 32], sizes = [2, 32], strides = [1, 1]} : vector<2x128xf32> to vector<2x32xf32>
    %86 = arith.negf %85 : vector<2x32xf32>
    %87 = math.exp %86 : vector<2x32xf32>
    %cst_26 = arith.constant 1.000000e+00 : f32
    %88 = vector.broadcast %cst_26 : f32 to vector<2x32xf32>
    %89 = arith.addf %88, %87 : vector<2x32xf32>
    %90 = arith.divf %88, %89 : vector<2x32xf32>
    %91 = vector.extract_strided_slice %78 {offsets = [0, 64], sizes = [2, 32], strides = [1, 1]} : vector<2x128xf32> to vector<2x32xf32>
    %92 = math.tanh %91 : vector<2x32xf32>
    %93 = vector.extract_strided_slice %78 {offsets = [0, 96], sizes = [2, 32], strides = [1, 1]} : vector<2x128xf32> to vector<2x32xf32>
    %94 = arith.negf %93 : vector<2x32xf32>
    %95 = math.exp %94 : vector<2x32xf32>
    %cst_27 = arith.constant 1.000000e+00 : f32
    %96 = vector.broadcast %cst_27 : f32 to vector<2x32xf32>
    %97 = arith.addf %96, %95 : vector<2x32xf32>
    %98 = arith.divf %96, %97 : vector<2x32xf32>
    %99 = arith.mulf %90, %67 : vector<2x32xf32>
    %100 = arith.mulf %84, %92 : vector<2x32xf32>
    %101 = arith.addf %99, %100 : vector<2x32xf32>
    %102 = math.tanh %101 : vector<2x32xf32>
    %103 = arith.mulf %98, %102 : vector<2x32xf32>
    %104 = arith.index_cast %c2_i32 : i32 to index
    %c0_28 = arith.constant 0 : index
    %c0_29 = arith.constant 0 : index
    %105 = vector.load %arg5[%104, %c0_28, %c0_29] : memref<8x2x32xf32, #tpu.memory_space<vmem>>, vector<1x2x32xf32>
    %106 = vector.shape_cast %105 : vector<1x2x32xf32> to vector<2x32xf32>
    %107 = vector.shape_cast %103 : vector<2x32xf32> to vector<1x2x32xf32>
    tpu.vector_store %arg5[%104, %c0_28, %c0_29], %107 {strides = array<i32>} : memref<8x2x32xf32, #tpu.memory_space<vmem>>, vector<1x2x32xf32>,
    %c3_i32 = arith.constant 3 : i32
    %108 = arith.index_cast %c3_i32 : i32 to index
    %c0_30 = arith.constant 0 : index
    %c0_31 = arith.constant 0 : index
    %109 = vector.load %arg1[%108, %c0_30, %c0_31] : memref<8x2x128xf32, #tpu.memory_space<vmem>>, vector<1x2x128xf32>
    %110 = vector.shape_cast %109 : vector<1x2x128xf32> to vector<2x128xf32>
    %cst_32 = arith.constant dense<0.000000e+00> : vector<2x128xf32>
    %111 = tpu.matmul %103, %3, %cst_32 {dimension_numbers = #tpu.dot_dimension_numbers<[1], [0], [0], [1], [0, 0, 1, 1], [], []>} : vector<2x32xf32>, vector<32x128xf32>, vector<2x128xf32> -> vector<2x128xf32>
    %112 = arith.addf %110, %111 : vector<2x128xf32>
    %113 = vector.extract_strided_slice %112 {offsets = [0, 0], sizes = [2, 32], strides = [1, 1]} : vector<2x128xf32> to vector<2x32xf32>
    %114 = arith.negf %113 : vector<2x32xf32>
    %115 = math.exp %114 : vector<2x32xf32>
    %cst_33 = arith.constant 1.000000e+00 : f32
    %116 = vector.broadcast %cst_33 : f32 to vector<2x32xf32>
    %117 = arith.addf %116, %115 : vector<2x32xf32>
    %118 = arith.divf %116, %117 : vector<2x32xf32>
    %119 = vector.extract_strided_slice %112 {offsets = [0, 32], sizes = [2, 32], strides = [1, 1]} : vector<2x128xf32> to vector<2x32xf32>
    %120 = arith.negf %119 : vector<2x32xf32>
    %121 = math.exp %120 : vector<2x32xf32>
    %cst_34 = arith.constant 1.000000e+00 : f32
    %122 = vector.broadcast %cst_34 : f32 to vector<2x32xf32>
    %123 = arith.addf %122, %121 : vector<2x32xf32>
    %124 = arith.divf %122, %123 : vector<2x32xf32>
    %125 = vector.extract_strided_slice %112 {offsets = [0, 64], sizes = [2, 32], strides = [1, 1]} : vector<2x128xf32> to vector<2x32xf32>
    %126 = math.tanh %125 : vector<2x32xf32>
    %127 = vector.extract_strided_slice %112 {offsets = [0, 96], sizes = [2, 32], strides = [1, 1]} : vector<2x128xf32> to vector<2x32xf32>
    %128 = arith.negf %127 : vector<2x32xf32>
    %129 = math.exp %128 : vector<2x32xf32>
    %cst_35 = arith.constant 1.000000e+00 : f32
    %130 = vector.broadcast %cst_35 : f32 to vector<2x32xf32>
    %131 = arith.addf %130, %129 : vector<2x32xf32>
    %132 = arith.divf %130, %131 : vector<2x32xf32>
    %133 = arith.mulf %124, %101 : vector<2x32xf32>
    %134 = arith.mulf %118, %126 : vector<2x32xf32>
    %135 = arith.addf %133, %134 : vector<2x32xf32>
    %136 = math.tanh %135 : vector<2x32xf32>
    %137 = arith.mulf %132, %136 : vector<2x32xf32>
    %138 = arith.index_cast %c3_i32 : i32 to index
    %c0_36 = arith.constant 0 : index
    %c0_37 = arith.constant 0 : index
    %139 = vector.load %arg5[%138, %c0_36, %c0_37] : memref<8x2x32xf32, #tpu.memory_space<vmem>>, vector<1x2x32xf32>
    %140 = vector.shape_cast %139 : vector<1x2x32xf32> to vector<2x32xf32>
    %141 = vector.shape_cast %137 : vector<2x32xf32> to vector<1x2x32xf32>
    tpu.vector_store %arg5[%138, %c0_36, %c0_37], %141 {strides = array<i32>} : memref<8x2x32xf32, #tpu.memory_space<vmem>>, vector<1x2x32xf32>,
    %c4_i32 = arith.constant 4 : i32
    %142 = arith.index_cast %c4_i32 : i32 to index
    %c0_38 = arith.constant 0 : index
    %c0_39 = arith.constant 0 : index
    %143 = vector.load %arg1[%142, %c0_38, %c0_39] : memref<8x2x128xf32, #tpu.memory_space<vmem>>, vector<1x2x128xf32>
    %144 = vector.shape_cast %143 : vector<1x2x128xf32> to vector<2x128xf32>
    %cst_40 = arith.constant dense<0.000000e+00> : vector<2x128xf32>
    %145 = tpu.matmul %137, %3, %cst_40 {dimension_numbers = #tpu.dot_dimension_numbers<[1], [0], [0], [1], [0, 0, 1, 1], [], []>} : vector<2x32xf32>, vector<32x128xf32>, vector<2x128xf32> -> vector<2x128xf32>
    %146 = arith.addf %144, %145 : vector<2x128xf32>
    %147 = vector.extract_strided_slice %146 {offsets = [0, 0], sizes = [2, 32], strides = [1, 1]} : vector<2x128xf32> to vector<2x32xf32>
    %148 = arith.negf %147 : vector<2x32xf32>
    %149 = math.exp %148 : vector<2x32xf32>
    %cst_41 = arith.constant 1.000000e+00 : f32
    %150 = vector.broadcast %cst_41 : f32 to vector<2x32xf32>
    %151 = arith.addf %150, %149 : vector<2x32xf32>
    %152 = arith.divf %150, %151 : vector<2x32xf32>
    %153 = vector.extract_strided_slice %146 {offsets = [0, 32], sizes = [2, 32], strides = [1, 1]} : vector<2x128xf32> to vector<2x32xf32>
    %154 = arith.negf %153 : vector<2x32xf32>
    %155 = math.exp %154 : vector<2x32xf32>
    %cst_42 = arith.constant 1.000000e+00 : f32
    %156 = vector.broadcast %cst_42 : f32 to vector<2x32xf32>
    %157 = arith.addf %156, %155 : vector<2x32xf32>
    %158 = arith.divf %156, %157 : vector<2x32xf32>
    %159 = vector.extract_strided_slice %146 {offsets = [0, 64], sizes = [2, 32], strides = [1, 1]} : vector<2x128xf32> to vector<2x32xf32>
    %160 = math.tanh %159 : vector<2x32xf32>
    %161 = vector.extract_strided_slice %146 {offsets = [0, 96], sizes = [2, 32], strides = [1, 1]} : vector<2x128xf32> to vector<2x32xf32>
    %162 = arith.negf %161 : vector<2x32xf32>
    %163 = math.exp %162 : vector<2x32xf32>
    %cst_43 = arith.constant 1.000000e+00 : f32
    %164 = vector.broadcast %cst_43 : f32 to vector<2x32xf32>
    %165 = arith.addf %164, %163 : vector<2x32xf32>
    %166 = arith.divf %164, %165 : vector<2x32xf32>
    %167 = arith.mulf %158, %135 : vector<2x32xf32>
    %168 = arith.mulf %152, %160 : vector<2x32xf32>
    %169 = arith.addf %167, %168 : vector<2x32xf32>
    %170 = math.tanh %169 : vector<2x32xf32>
    %171 = arith.mulf %166, %170 : vector<2x32xf32>
    %172 = arith.index_cast %c4_i32 : i32 to index
    %c0_44 = arith.constant 0 : index
    %c0_45 = arith.constant 0 : index
    %173 = vector.load %arg5[%172, %c0_44, %c0_45] : memref<8x2x32xf32, #tpu.memory_space<vmem>>, vector<1x2x32xf32>
    %174 = vector.shape_cast %173 : vector<1x2x32xf32> to vector<2x32xf32>
    %175 = vector.shape_cast %171 : vector<2x32xf32> to vector<1x2x32xf32>
    tpu.vector_store %arg5[%172, %c0_44, %c0_45], %175 {strides = array<i32>} : memref<8x2x32xf32, #tpu.memory_space<vmem>>, vector<1x2x32xf32>,
    %c5_i32 = arith.constant 5 : i32
    %176 = arith.index_cast %c5_i32 : i32 to index
    %c0_46 = arith.constant 0 : index
    %c0_47 = arith.constant 0 : index
    %177 = vector.load %arg1[%176, %c0_46, %c0_47] : memref<8x2x128xf32, #tpu.memory_space<vmem>>, vector<1x2x128xf32>
    %178 = vector.shape_cast %177 : vector<1x2x128xf32> to vector<2x128xf32>
    %cst_48 = arith.constant dense<0.000000e+00> : vector<2x128xf32>
    %179 = tpu.matmul %171, %3, %cst_48 {dimension_numbers = #tpu.dot_dimension_numbers<[1], [0], [0], [1], [0, 0, 1, 1], [], []>} : vector<2x32xf32>, vector<32x128xf32>, vector<2x128xf32> -> vector<2x128xf32>
    %180 = arith.addf %178, %179 : vector<2x128xf32>
    %181 = vector.extract_strided_slice %180 {offsets = [0, 0], sizes = [2, 32], strides = [1, 1]} : vector<2x128xf32> to vector<2x32xf32>
    %182 = arith.negf %181 : vector<2x32xf32>
    %183 = math.exp %182 : vector<2x32xf32>
    %cst_49 = arith.constant 1.000000e+00 : f32
    %184 = vector.broadcast %cst_49 : f32 to vector<2x32xf32>
    %185 = arith.addf %184, %183 : vector<2x32xf32>
    %186 = arith.divf %184, %185 : vector<2x32xf32>
    %187 = vector.extract_strided_slice %180 {offsets = [0, 32], sizes = [2, 32], strides = [1, 1]} : vector<2x128xf32> to vector<2x32xf32>
    %188 = arith.negf %187 : vector<2x32xf32>
    %189 = math.exp %188 : vector<2x32xf32>
    %cst_50 = arith.constant 1.000000e+00 : f32
    %190 = vector.broadcast %cst_50 : f32 to vector<2x32xf32>
    %191 = arith.addf %190, %189 : vector<2x32xf32>
    %192 = arith.divf %190, %191 : vector<2x32xf32>
    %193 = vector.extract_strided_slice %180 {offsets = [0, 64], sizes = [2, 32], strides = [1, 1]} : vector<2x128xf32> to vector<2x32xf32>
    %194 = math.tanh %193 : vector<2x32xf32>
    %195 = vector.extract_strided_slice %180 {offsets = [0, 96], sizes = [2, 32], strides = [1, 1]} : vector<2x128xf32> to vector<2x32xf32>
    %196 = arith.negf %195 : vector<2x32xf32>
    %197 = math.exp %196 : vector<2x32xf32>
    %cst_51 = arith.constant 1.000000e+00 : f32
    %198 = vector.broadcast %cst_51 : f32 to vector<2x32xf32>
    %199 = arith.addf %198, %197 : vector<2x32xf32>
    %200 = arith.divf %198, %199 : vector<2x32xf32>
    %201 = arith.mulf %192, %169 : vector<2x32xf32>
    %202 = arith.mulf %186, %194 : vector<2x32xf32>
    %203 = arith.addf %201, %202 : vector<2x32xf32>
    %204 = math.tanh %203 : vector<2x32xf32>
    %205 = arith.mulf %200, %204 : vector<2x32xf32>
    %206 = arith.index_cast %c5_i32 : i32 to index
    %c0_52 = arith.constant 0 : index
    %c0_53 = arith.constant 0 : index
    %207 = vector.load %arg5[%206, %c0_52, %c0_53] : memref<8x2x32xf32, #tpu.memory_space<vmem>>, vector<1x2x32xf32>
    %208 = vector.shape_cast %207 : vector<1x2x32xf32> to vector<2x32xf32>
    %209 = vector.shape_cast %205 : vector<2x32xf32> to vector<1x2x32xf32>
    tpu.vector_store %arg5[%206, %c0_52, %c0_53], %209 {strides = array<i32>} : memref<8x2x32xf32, #tpu.memory_space<vmem>>, vector<1x2x32xf32>,
    %c6_i32 = arith.constant 6 : i32
    %210 = arith.index_cast %c6_i32 : i32 to index
    %c0_54 = arith.constant 0 : index
    %c0_55 = arith.constant 0 : index
    %211 = vector.load %arg1[%210, %c0_54, %c0_55] : memref<8x2x128xf32, #tpu.memory_space<vmem>>, vector<1x2x128xf32>
    %212 = vector.shape_cast %211 : vector<1x2x128xf32> to vector<2x128xf32>
    %cst_56 = arith.constant dense<0.000000e+00> : vector<2x128xf32>
    %213 = tpu.matmul %205, %3, %cst_56 {dimension_numbers = #tpu.dot_dimension_numbers<[1], [0], [0], [1], [0, 0, 1, 1], [], []>} : vector<2x32xf32>, vector<32x128xf32>, vector<2x128xf32> -> vector<2x128xf32>
    %214 = arith.addf %212, %213 : vector<2x128xf32>
    %215 = vector.extract_strided_slice %214 {offsets = [0, 0], sizes = [2, 32], strides = [1, 1]} : vector<2x128xf32> to vector<2x32xf32>
    %216 = arith.negf %215 : vector<2x32xf32>
    %217 = math.exp %216 : vector<2x32xf32>
    %cst_57 = arith.constant 1.000000e+00 : f32
    %218 = vector.broadcast %cst_57 : f32 to vector<2x32xf32>
    %219 = arith.addf %218, %217 : vector<2x32xf32>
    %220 = arith.divf %218, %219 : vector<2x32xf32>
    %221 = vector.extract_strided_slice %214 {offsets = [0, 32], sizes = [2, 32], strides = [1, 1]} : vector<2x128xf32> to vector<2x32xf32>
    %222 = arith.negf %221 : vector<2x32xf32>
    %223 = math.exp %222 : vector<2x32xf32>
    %cst_58 = arith.constant 1.000000e+00 : f32
    %224 = vector.broadcast %cst_58 : f32 to vector<2x32xf32>
    %225 = arith.addf %224, %223 : vector<2x32xf32>
    %226 = arith.divf %224, %225 : vector<2x32xf32>
    %227 = vector.extract_strided_slice %214 {offsets = [0, 64], sizes = [2, 32], strides = [1, 1]} : vector<2x128xf32> to vector<2x32xf32>
    %228 = math.tanh %227 : vector<2x32xf32>
    %229 = vector.extract_strided_slice %214 {offsets = [0, 96], sizes = [2, 32], strides = [1, 1]} : vector<2x128xf32> to vector<2x32xf32>
    %230 = arith.negf %229 : vector<2x32xf32>
    %231 = math.exp %230 : vector<2x32xf32>
    %cst_59 = arith.constant 1.000000e+00 : f32
    %232 = vector.broadcast %cst_59 : f32 to vector<2x32xf32>
    %233 = arith.addf %232, %231 : vector<2x32xf32>
    %234 = arith.divf %232, %233 : vector<2x32xf32>
    %235 = arith.mulf %226, %203 : vector<2x32xf32>
    %236 = arith.mulf %220, %228 : vector<2x32xf32>
    %237 = arith.addf %235, %236 : vector<2x32xf32>
    %238 = math.tanh %237 : vector<2x32xf32>
    %239 = arith.mulf %234, %238 : vector<2x32xf32>
    %240 = arith.index_cast %c6_i32 : i32 to index
    %c0_60 = arith.constant 0 : index
    %c0_61 = arith.constant 0 : index
    %241 = vector.load %arg5[%240, %c0_60, %c0_61] : memref<8x2x32xf32, #tpu.memory_space<vmem>>, vector<1x2x32xf32>
    %242 = vector.shape_cast %241 : vector<1x2x32xf32> to vector<2x32xf32>
    %243 = vector.shape_cast %239 : vector<2x32xf32> to vector<1x2x32xf32>
    tpu.vector_store %arg5[%240, %c0_60, %c0_61], %243 {strides = array<i32>} : memref<8x2x32xf32, #tpu.memory_space<vmem>>, vector<1x2x32xf32>,
    %c7_i32 = arith.constant 7 : i32
    %244 = arith.index_cast %c7_i32 : i32 to index
    %c0_62 = arith.constant 0 : index
    %c0_63 = arith.constant 0 : index
    %245 = vector.load %arg1[%244, %c0_62, %c0_63] : memref<8x2x128xf32, #tpu.memory_space<vmem>>, vector<1x2x128xf32>
    %246 = vector.shape_cast %245 : vector<1x2x128xf32> to vector<2x128xf32>
    %cst_64 = arith.constant dense<0.000000e+00> : vector<2x128xf32>
    %247 = tpu.matmul %239, %3, %cst_64 {dimension_numbers = #tpu.dot_dimension_numbers<[1], [0], [0], [1], [0, 0, 1, 1], [], []>} : vector<2x32xf32>, vector<32x128xf32>, vector<2x128xf32> -> vector<2x128xf32>
    %248 = arith.addf %246, %247 : vector<2x128xf32>
    %249 = vector.extract_strided_slice %248 {offsets = [0, 0], sizes = [2, 32], strides = [1, 1]} : vector<2x128xf32> to vector<2x32xf32>
    %250 = arith.negf %249 : vector<2x32xf32>
    %251 = math.exp %250 : vector<2x32xf32>
    %cst_65 = arith.constant 1.000000e+00 : f32
    %252 = vector.broadcast %cst_65 : f32 to vector<2x32xf32>
    %253 = arith.addf %252, %251 : vector<2x32xf32>
    %254 = arith.divf %252, %253 : vector<2x32xf32>
    %255 = vector.extract_strided_slice %248 {offsets = [0, 32], sizes = [2, 32], strides = [1, 1]} : vector<2x128xf32> to vector<2x32xf32>
    %256 = arith.negf %255 : vector<2x32xf32>
    %257 = math.exp %256 : vector<2x32xf32>
    %cst_66 = arith.constant 1.000000e+00 : f32
    %258 = vector.broadcast %cst_66 : f32 to vector<2x32xf32>
    %259 = arith.addf %258, %257 : vector<2x32xf32>
    %260 = arith.divf %258, %259 : vector<2x32xf32>
    %261 = vector.extract_strided_slice %248 {offsets = [0, 64], sizes = [2, 32], strides = [1, 1]} : vector<2x128xf32> to vector<2x32xf32>
    %262 = math.tanh %261 : vector<2x32xf32>
    %263 = vector.extract_strided_slice %248 {offsets = [0, 96], sizes = [2, 32], strides = [1, 1]} : vector<2x128xf32> to vector<2x32xf32>
    %264 = arith.negf %263 : vector<2x32xf32>
    %265 = math.exp %264 : vector<2x32xf32>
    %cst_67 = arith.constant 1.000000e+00 : f32
    %266 = vector.broadcast %cst_67 : f32 to vector<2x32xf32>
    %267 = arith.addf %266, %265 : vector<2x32xf32>
    %268 = arith.divf %266, %267 : vector<2x32xf32>
    %269 = arith.mulf %260, %237 : vector<2x32xf32>
    %270 = arith.mulf %254, %262 : vector<2x32xf32>
    %271 = arith.addf %269, %270 : vector<2x32xf32>
    %272 = math.tanh %271 : vector<2x32xf32>
    %273 = arith.mulf %268, %272 : vector<2x32xf32>
    %274 = arith.index_cast %c7_i32 : i32 to index
    %c0_68 = arith.constant 0 : index
    %c0_69 = arith.constant 0 : index
    %275 = vector.load %arg5[%274, %c0_68, %c0_69] : memref<8x2x32xf32, #tpu.memory_space<vmem>>, vector<1x2x32xf32>
    %276 = vector.shape_cast %275 : vector<1x2x32xf32> to vector<2x32xf32>
    %277 = vector.shape_cast %273 : vector<2x32xf32> to vector<1x2x32xf32>
    tpu.vector_store %arg5[%274, %c0_68, %c0_69], %277 {strides = array<i32>} : memref<8x2x32xf32, #tpu.memory_space<vmem>>, vector<1x2x32xf32>,
    %c8_i32 = arith.constant 8 : i32
    %c0_70 = arith.constant 0 : index
    %c0_71 = arith.constant 0 : index
    %278 = vector.load %arg8[%c0_70, %c0_71] : memref<2x32xf32, #tpu.memory_space<vmem>>, vector<2x32xf32>
    tpu.vector_store %arg8[%c0_70, %c0_71], %273 {strides = array<i32>} : memref<2x32xf32, #tpu.memory_space<vmem>>, vector<2x32xf32>,
    %c0_72 = arith.constant 0 : index
    %c0_73 = arith.constant 0 : index
    %279 = vector.load %arg9[%c0_72, %c0_73] : memref<2x32xf32, #tpu.memory_space<vmem>>, vector<2x32xf32>
    tpu.vector_store %arg9[%c0_72, %c0_73], %271 {strides = array<i32>} : memref<2x32xf32, #tpu.memory_space<vmem>>, vector<2x32xf32>,
    %c0_i32_74 = arith.constant 0 : i32
    %280 = arith.cmpi eq, %arg0, %c0_i32_74 : i32
    %281 = arith.extui %280 : i1 to i32
    %c0_i32_75 = arith.constant 0 : i32
    %282 = arith.cmpi ne, %281, %c0_i32_75 : i32
    scf.if %282 {
      %c0_76 = arith.constant 0 : index
      %c0_77 = arith.constant 0 : index
      %283 = vector.load %arg6[%c0_76, %c0_77] : memref<2x32xf32, #tpu.memory_space<vmem>>, vector<2x32xf32>
      tpu.vector_store %arg6[%c0_76, %c0_77], %273 {strides = array<i32>} : memref<2x32xf32, #tpu.memory_space<vmem>>, vector<2x32xf32>,
      %c0_78 = arith.constant 0 : index
      %c0_79 = arith.constant 0 : index
      %284 = vector.load %arg7[%c0_78, %c0_79] : memref<2x32xf32, #tpu.memory_space<vmem>>, vector<2x32xf32>
      tpu.vector_store %arg7[%c0_78, %c0_79], %271 {strides = array<i32>} : memref<2x32xf32, #tpu.memory_space<vmem>>, vector<2x32xf32>,
    } else {
    }
    return
  }
  func.func @transform_0(%arg0: i32) -> (i32, i32, i32) {
    %c0_i32 = arith.constant 0 : i32
    %c0_i32_0 = arith.constant 0 : i32
    %c0_i32_1 = arith.constant 0 : i32
    return %arg0, %c0_i32, %c0_i32_0 : i32, i32, i32
  }
  func.func @transform_1(%arg0: i32) -> (i32, i32) {
    %c0_i32 = arith.constant 0 : i32
    %c0_i32_0 = arith.constant 0 : i32
    %c0_i32_1 = arith.constant 0 : i32
    return %c0_i32, %c0_i32_0 : i32, i32
  }
  func.func @transform_2(%arg0: i32) -> (i32, i32) {
    %c0_i32 = arith.constant 0 : i32
    %c0_i32_0 = arith.constant 0 : i32
    %c0_i32_1 = arith.constant 0 : i32
    return %c0_i32, %c0_i32_0 : i32, i32
  }
  func.func @transform_3(%arg0: i32) -> (i32, i32) {
    %c0_i32 = arith.constant 0 : i32
    %c0_i32_0 = arith.constant 0 : i32
    %c0_i32_1 = arith.constant 0 : i32
    return %c0_i32, %c0_i32_0 : i32, i32
  }
  func.func @transform_4(%arg0: i32) -> (i32, i32, i32) {
    %c0_i32 = arith.constant 0 : i32
    %c0_i32_0 = arith.constant 0 : i32
    %c0_i32_1 = arith.constant 0 : i32
    return %arg0, %c0_i32, %c0_i32_0 : i32, i32, i32
  }
  func.func @transform_5(%arg0: i32) -> (i32, i32) {
    %c0_i32 = arith.constant 0 : i32
    %c0_i32_0 = arith.constant 0 : i32
    %c0_i32_1 = arith.constant 0 : i32
    return %c0_i32, %c0_i32_0 : i32, i32
  }
  func.func @transform_6(%arg0: i32) -> (i32, i32) {
    %c0_i32 = arith.constant 0 : i32
    %c0_i32_0 = arith.constant 0 : i32
    %c0_i32_1 = arith.constant 0 : i32
    return %c0_i32, %c0_i32_0 : i32, i32
  }
}

module attributes {stable_mosaic.version = 11 : i64} {
  func.func @_fc_log_softmax_kernel(%arg0: i32, %arg1: memref<16x32xf32, #tpu.memory_space<vmem>>, %arg2: memref<32x128xf32, #tpu.memory_space<vmem>>, %arg3: memref<1x128xf32, #tpu.memory_space<vmem>>, %arg4: memref<16x128xf32, #tpu.memory_space<vmem>>) attributes {dimension_semantics = [#tpu.dimension_semantics<parallel>], iteration_bounds = array<i64: 1>, scalar_prefetch = 0 : i64, scratch_operands = 0 : i64, tpu.core_type = #tpu.core_type<tc>, window_params = [{transform_indices = @transform_0, window_bounds = array<i64: 16, 32>}, {pipeline_mode = #tpu.pipeline_mode<synchronous>, transform_indices = @transform_1, window_bounds = array<i64: 32, 128>}, {pipeline_mode = #tpu.pipeline_mode<synchronous>, transform_indices = @transform_2, window_bounds = array<i64: 1, 128>}, {transform_indices = @transform_3, window_bounds = array<i64: 16, 128>}]} {
    %c0 = arith.constant 0 : index
    %c0_0 = arith.constant 0 : index
    %0 = vector.load %arg1[%c0, %c0_0] : memref<16x32xf32, #tpu.memory_space<vmem>>, vector<16x32xf32>
    %c0_1 = arith.constant 0 : index
    %c0_2 = arith.constant 0 : index
    %1 = vector.load %arg2[%c0_1, %c0_2] : memref<32x128xf32, #tpu.memory_space<vmem>>, vector<32x128xf32>
    %cst = arith.constant dense<0.000000e+00> : vector<16x128xf32>
    %2 = tpu.matmul %0, %1, %cst {dimension_numbers = #tpu.dot_dimension_numbers<[1], [0], [0], [1], [0, 0, 1, 1], [], []>} : vector<16x32xf32>, vector<32x128xf32>, vector<16x128xf32> -> vector<16x128xf32>
    %c0_3 = arith.constant 0 : index
    %c0_4 = arith.constant 0 : index
    %3 = vector.load %arg3[%c0_3, %c0_4] : memref<1x128xf32, #tpu.memory_space<vmem>>, vector<1x128xf32>
    %4 = vector.broadcast %3 : vector<1x128xf32> to vector<16x128xf32>
    %5 = arith.addf %2, %4 : vector<16x128xf32>
    %cst_5 = arith.constant dense<0xFF800000> : vector<16xf32>
    %6 = vector.multi_reduction <maximumf>, %5, %cst_5 [1] : vector<16x128xf32> to vector<16xf32>
    %7 = vector.shape_cast %6 : vector<16xf32> to vector<16x1xf32>
    %8 = vector.broadcast %7 : vector<16x1xf32> to vector<16x128xf32>
    %9 = arith.subf %5, %8 : vector<16x128xf32>
    %10 = math.exp %9 : vector<16x128xf32>
    %cst_6 = arith.constant dense<0.000000e+00> : vector<16xf32>
    %11 = vector.multi_reduction <add>, %10, %cst_6 [1] : vector<16x128xf32> to vector<16xf32>
    %12 = vector.shape_cast %11 : vector<16xf32> to vector<16x1xf32>
    %13 = math.log %12 : vector<16x1xf32>
    %14 = arith.addf %7, %13 : vector<16x1xf32>
    %15 = vector.broadcast %14 : vector<16x1xf32> to vector<16x128xf32>
    %16 = arith.subf %5, %15 : vector<16x128xf32>
    %c0_7 = arith.constant 0 : index
    %c0_8 = arith.constant 0 : index
    %17 = vector.load %arg4[%c0_7, %c0_8] : memref<16x128xf32, #tpu.memory_space<vmem>>, vector<16x128xf32>
    tpu.vector_store %arg4[%c0_7, %c0_8], %16 {strides = array<i32>} : memref<16x128xf32, #tpu.memory_space<vmem>>, vector<16x128xf32>,
    return
  }
  func.func @transform_0(%arg0: i32) -> (i32, i32) {
    %c0_i32 = arith.constant 0 : i32
    %c0_i32_0 = arith.constant 0 : i32
    return %arg0, %c0_i32 : i32, i32
  }
  func.func @transform_1(%arg0: i32) -> (i32, i32) {
    %c0_i32 = arith.constant 0 : i32
    %c0_i32_0 = arith.constant 0 : i32
    %c0_i32_1 = arith.constant 0 : i32
    return %c0_i32, %c0_i32_0 : i32, i32
  }
  func.func @transform_2(%arg0: i32) -> (i32, i32) {
    %c0_i32 = arith.constant 0 : i32
    %c0_i32_0 = arith.constant 0 : i32
    %c0_i32_1 = arith.constant 0 : i32
    return %c0_i32, %c0_i32_0 : i32, i32
  }
  func.func @transform_3(%arg0: i32) -> (i32, i32) {
    %c0_i32 = arith.constant 0 : i32
    %c0_i32_0 = arith.constant 0 : i32
    return %arg0, %c0_i32 : i32, i32
  }
}

</mosaic_0001>

<llo_original>
// kernel: actor_network_forward.3
$region0: #{actor_network_forward.3}
  #allocation0 [shape = 'u32[]', space=smem, size = 0x4, offset = 0x4, fixed_abs, tag = 'smem constant byte address 0x4 - core index']
  #allocation1 [shape = 'u32[144,128]{1,0:T(1,128)}', space=vmem, size = 0x12000, scoped, tag = 'internal scratch']
  %s0 = inlined_call_operand.vmem [shape: f32[16,32], index: 0, kind: input, shape index: {}]
  %s1 = inlined_call_operand.vmem [shape: f32[32,128], index: 1, kind: input, shape index: {}]
  %s2 = inlined_call_operand.vmem [shape: f32[1,128], index: 2, kind: input, shape index: {}]
  %s3 = inlined_call_operand.vmem [shape: f32[16,128], index: 3, kind: output, shape index: {}]
  %s4 = sld [smem:[#allocation0]]
  $region22: #{actor_network_forward.3} parent=0
    _
  %s6 = ssub.s32 1, %s4
  %s7 = scalar_select 0, %s6, %s4
  // Predicated region
  $region2: #{actor_network_forward.3} parent=0 // pred_check
    _
  $region3: #{actor_network_forward.3} parent=0 // pred_check_branch
    %9 = sbr.rel (0) target = $region5
  $region4: #{actor_network_forward.3} parent=0 // pred_region
    _
  $region5: #{actor_network_forward.3} parent=0 // pred_fallthru
    _
  // Predicated region
  $region6: #{actor_network_forward.3} parent=0 // pred_check
    _
  $region7: #{actor_network_forward.3} parent=0 // pred_check_branch
    %11 = sbr.rel (0) target = $region9
  $region8: #{actor_network_forward.3} parent=0 // pred_region
    _
  $region9: #{actor_network_forward.3} parent=0 // pred_fallthru
    _
  // Predicated region
  $region10: #{actor_network_forward.3} parent=0 // pred_check
    _
  $region11: #{actor_network_forward.3} parent=0 // pred_check_branch
    %13 = sbr.rel (0) target = $region13
  $region12: #{actor_network_forward.3} parent=0 // pred_region
    _
  $region13: #{actor_network_forward.3} parent=0 // pred_fallthru
    _
  %v14 = vld [vmem:[%s0] sm:$0xff]
  %v15 = vld [vmem:[%s0 + $0x8] sm:$0xff]
  %v16 = vld [vmem:[%s1] sm:$0xff]
  %v17 = vld [vmem:[%s1 + $0x8] sm:$0xff]
  %v18 = vld [vmem:[%s1 + $0x10] sm:$0xff]
  %v19 = vld [vmem:[%s1 + $0x18] sm:$0xff]
  %v20 = vld [vmem:[%s2] sm:$0x1]
  %v22 = vlaneseq
  %v23 = vshrl.u32 %v22, 7
  %v24 = vsub.s32 0, %v23
  %v25 = vrot.slane %v20, %v24
  %vm27 = vcmask 261120
  %v29 = vsel %vm27, %v14, 0
  %v32 = vsel %vm27, %v15, 0
  %34 = vmatprep.subr.mxu0 0.0
  %35 = vmatpush1.msra.mxu0 %v16
  %36 = vmatprep.subr.mxu0 0.0
  %37 = vmatpush1.msra.mxu0 %v17
  %38 = vmatprep.subr.mxu0 0.0
  %39 = vmatpush1.msra.mxu0 %v18
  %40 = vmatprep.subr.mxu0 0.0
  %41 = vmatpush1.msra.mxu0 %v19
  %42 = vmatprep.subr.mxu0 0.0
  %43 = vmatpush1.msra.mxu0 0.0
  %44 = vmatprep.subr.mxu0 0.0
  %45 = vmatpush1.msra.mxu0 0.0
  %46 = vmatprep.subr.mxu0 0.0
  %47 = vmatpush1.msra.mxu0 0.0
  %48 = vmatprep.subr.mxu0 0.0
  %49 = vmatpush1.msra.mxu0 0.0
  %50 = vmatprep.subr.mxu0 0.0
  %51 = vmatpush1.msra.mxu0 0.0
  %52 = vmatprep.subr.mxu0 0.0
  %53 = vmatpush1.msra.mxu0 0.0
  %54 = vmatprep.subr.mxu0 0.0
  %55 = vmatpush1.msra.mxu0 0.0
  %56 = vmatprep.subr.mxu0 0.0
  %57 = vmatpush1.msra.mxu0 0.0
  %58 = vmatprep.subr.mxu0 0.0
  %59 = vmatpush1.msra.mxu0 0.0
  %60 = vmatprep.subr.mxu0 0.0
  %61 = vmatpush1.msra.mxu0 0.0
  %62 = vmatprep.subr.mxu0 0.0
  %63 = vmatpush1.msra.mxu0 0.0
  %64 = vmatprep.subr.mxu0 0.0
  %65 = vmatpush1.msra.mxu0 0.0
  %66 = vmatprep.subr.mxu0 0.0
  %67 = vmatpush1.msra.mxu0 0.0
  %68 = vmatprep.subr.mxu0 0.0
  %69 = vmatpush1.msra.mxu0 0.0
  %70 = vmatprep.subr.mxu0 0.0
  %71 = vmatpush1.msra.mxu0 0.0
  %72 = vmatprep.subr.mxu0 0.0
  %73 = vmatpush1.msra.mxu0 0.0
  %74 = vmatprep.subr.mxu0 0.0
  %75 = vmatpush1.msra.mxu0 0.0
  %76 = vmatprep.subr.mxu0 0.0
  %77 = vmatpush1.msra.mxu0 0.0
  %78 = vmatprep.subr.mxu0 0.0
  %79 = vmatpush1.msra.mxu0 0.0
  %80 = vmatprep.subr.mxu0 0.0
  %81 = vmatpush1.msra.mxu0 0.0
  %82 = vmatprep.subr.mxu0 0.0
  %83 = vmatpush1.msra.mxu0 0.0
  %84 = vmatprep.subr.mxu0 0.0
  %85 = vmatpush1.msra.mxu0 0.0
  %86 = vmatprep.subr.mxu0 0.0
  %87 = vmatpush1.msra.mxu0 0.0
  %88 = vmatprep.subr.mxu0 0.0
  %89 = vmatpush1.msra.mxu0 0.0
  %90 = vmatprep.subr.mxu0 0.0
  %91 = vmatpush1.msra.mxu0 0.0
  %92 = vmatprep.subr.mxu0 0.0
  %93 = vmatpush1.msra.mxu0 0.0
  %94 = vmatprep.subr.mxu0 0.0
  %95 = vmatpush1.msra.mxu0 0.0
  %96 = vmatprep.subr.mxu0 0.0
  %97 = vmatpush1.msra.mxu0 0.0
  %98 = vmatprep.mubr.f32.mxu0 0.0
  %99 = vmatmul.mubr.f32.gmra.mrb[0].mxu0 %v29
  %v100 = vpop.f32.mrb[0].mxu0
  %v101 = vadd.f32 %v25, %v100
  %v102 = vpop.f32.mrb[0].mxu0
  %103 = vmatprep.mubr.f32.mxu0 0.0
  %104 = vmatmul.mubr.f32.gmra.mrb[0].mxu0 %v32
  %v105 = vpop.f32.mrb[0].mxu0
  %v106 = vadd.f32 %v25, %v105
  %v107 = vpop.f32.mrb[0].mxu0
  %108 = vdwg.mxu0
  %109 = vmax.xlane.f32.xlu0 %v101
  %v110 = vpop.xlane.xlu0 %109
  %111 = vmax.xlane.f32.xlu0 %v106
  %v112 = vpop.xlane.xlu0 %111
  %v113 = vsub.f32 %v101, %v110
  %v114 = vsub.f32 %v106, %v112
  %v115 = vmul.f32 %v113, 1.442695
  %v116 = vpow.pop %v115
  %v117 = vmul.f32 %v114, 1.442695
  %v118 = vpow.pop %v117
  %119 = vadd.xlane.f32.xlu0 %v116
  %v120 = vpop.xlane.xlu0 %119
  %121 = vadd.xlane.f32.xlu0 %v118
  %v122 = vpop.xlane.xlu0 %121
  %v123 = vlog2.pop %v120
  %v124 = vmul.f32 %v123, 0.6931472
  %v125 = vlog2.pop %v122
  %v126 = vmul.f32 %v125, 0.6931472
  %v127 = vadd.f32 %v110, %v124
  %v128 = vadd.f32 %v112, %v126
  %v129 = vsub.f32 %v101, %v127
  %v130 = vsub.f32 %v106, %v128
  %131 = vst [vmem:[%s3] sm:$0xff] %v129
  %132 = vst [vmem:[%s3 + $0x8] sm:$0xff] %v130
  // Predicated region
  $region14: #{actor_network_forward.3} parent=0 // pred_check
    _
  $region15: #{actor_network_forward.3} parent=0 // pred_check_branch
    %134 = sbr.rel (0) target = $region17
  $region16: #{actor_network_forward.3} parent=0 // pred_region
    _
  $region17: #{actor_network_forward.3} parent=0 // pred_fallthru
    _
  // Predicated region
  $region18: #{actor_network_forward.3} parent=0 // pred_check
    _
  $region19: #{actor_network_forward.3} parent=0 // pred_check_branch
    %136 = sbr.rel (0) target = $region21
  $region20: #{actor_network_forward.3} parent=0 // pred_region
    _
  $region21: #{actor_network_forward.3} parent=0 // pred_fallthru
    _

// kernel: actor_network_forward.2
$region0: #{actor_network_forward.2}
  #allocation0 [shape = 'u32[]', space=smem, size = 0x4, offset = 0x4, fixed_abs, tag = 'smem constant byte address 0x4 - core index']
  #allocation1 [shape = 'u32[144,128]{1,0:T(1,128)}', space=vmem, size = 0x12000, scoped, tag = 'internal scratch']
  #allocation2 [shape = 'f32[2,32]{1,0:T(2,128)}', space=vmem, size = 0x400, scoped, tag = 'scratch operand']
  #allocation3 [shape = 'f32[2,32]{1,0:T(2,128)}', space=vmem, size = 0x400, scoped, tag = 'scratch operand']
  %s0 = inlined_call_operand.vmem [shape: f32[8,2,128], index: 0, kind: input, shape index: {}]
  %s1 = inlined_call_operand.vmem [shape: f32[2,32], index: 1, kind: input, shape index: {}]
  %s2 = inlined_call_operand.vmem [shape: f32[2,32], index: 2, kind: input, shape index: {}]
  %s3 = inlined_call_operand.vmem [shape: f32[32,128], index: 3, kind: input, shape index: {}]
  %s4 = inlined_call_operand.vmem [shape: f32[8,2,32], index: 4, kind: output, shape index: {0}]
  %s5 = inlined_call_operand.hbm [shape: f32[2,32], index: 5, kind: output, shape index: {1}]
  %s6 = inlined_call_operand.hbm [shape: f32[2,32], index: 6, kind: output, shape index: {2}]
  %7 = xla_tuple %s4, %s5, %s6
  %s8 = sld [smem:[#allocation0]]
  $region50: #{actor_network_forward.2} parent=0
    _
  %s10 = ssub.s32 1, %s8
  %s11 = scalar_select 0, %s10, %s8
  $region1: #{actor_network_forward.2} parent=0
    #allocation4 [shape = 'u8[1024]{0}', space=vmem, size = 0x400, scoped, tag = 'output window, operand 1, single buffered']
    #allocation5 [shape = 's32[1]{0}', space=sflag, size = 0x4, scoped, tag = 'scoped memory for actor_network_forward.2']
    #allocation6 [shape = 'u8[1024]{0}', space=vmem, size = 0x400, scoped, tag = 'output window, operand 2, single buffered']
    #allocation7 [shape = 's32[1]{0}', space=sflag, size = 0x4, scoped, tag = 'scoped memory for actor_network_forward.2']
    %12 = vsyncpa [#allocation5], 0
    %13 = vsyncpa [#allocation7], 0
    // Predicated region
    $region2: #{actor_network_forward.2} parent=1 // pred_check
      _
    $region3: #{actor_network_forward.2} parent=1 // pred_check_branch
      %15 = sbr.rel (0) target = $region5
    $region4: #{actor_network_forward.2} parent=1 // pred_region
      _
    $region5: #{actor_network_forward.2} parent=1 // pred_fallthru
      _
    // Predicated region
    $region6: #{actor_network_forward.2} parent=1 // pred_check
      _
    $region7: #{actor_network_forward.2} parent=1 // pred_check_branch
      %17 = sbr.rel (0) target = $region9
    $region8: #{actor_network_forward.2} parent=1 // pred_region
      _
    $region9: #{actor_network_forward.2} parent=1 // pred_fallthru
      _
    // Predicated region
    $region10: #{actor_network_forward.2} parent=1 // pred_check
      _
    $region11: #{actor_network_forward.2} parent=1 // pred_check_branch
      %19 = sbr.rel (0) target = $region13
    $region12: #{actor_network_forward.2} parent=1 // pred_region
      _
    $region13: #{actor_network_forward.2} parent=1 // pred_fallthru
      _
    // Predicated region
    $region14: #{actor_network_forward.2} parent=1 // pred_check
      _
    $region15: #{actor_network_forward.2} parent=1 // pred_check_branch
      %21 = sbr.rel (0) target = $region17
    $region16: #{actor_network_forward.2} parent=1 // pred_region
      _
    $region17: #{actor_network_forward.2} parent=1 // pred_fallthru
      _
    %p22 = scmp.eq.s32.totalorder 0, 0
    // Predicated region
    $region18: #{actor_network_forward.2} parent=1 // pred_check
      %p23 = pneg %p22
    $region19: #{actor_network_forward.2} parent=1 // pred_check_branch
      %25 = sbr.rel (%p23) target = $region21
    $region20: #{actor_network_forward.2} parent=1 // pred_region
      %v26 = vld [vmem:[%s1] sm:$0x3]
      %vm27 = vcmask 254976
      %28 = vst.msk [vmem:[#allocation2] sm:$0x3] %vm27, %v26
      %v29 = vld [vmem:[%s2] sm:$0x3]
      %30 = vst.msk [vmem:[#allocation3] sm:$0x3] %vm27, %v29
    $region21: #{actor_network_forward.2} parent=1 // pred_fallthru
      _
    %v31 = vld [vmem:[%s3] sm:$0xff]
    %v32 = vld [vmem:[%s3 + $0x8] sm:$0xff]
    %v33 = vld [vmem:[%s3 + $0x10] sm:$0xff]
    %v34 = vld [vmem:[%s3 + $0x18] sm:$0xff]
    %v35 = vld [vmem:[#allocation2] sm:$0x3]
    %v36 = vld [vmem:[#allocation3] sm:$0x3]
    %v37 = vld [vmem:[%s0] sm:$0x3]
    %vm38 = vcmask 261120
    %v40 = vsel %vm38, %v35, 0
    %42 = vmatprep.subr.mxu0 0.0
    %43 = vmatpush1.msra.mxu0 %v31
    %44 = vmatprep.subr.mxu0 0.0
    %45 = vmatpush1.msra.mxu0 %v32
    %46 = vmatprep.subr.mxu0 0.0
    %47 = vmatpush1.msra.mxu0 %v33
    %48 = vmatprep.subr.mxu0 0.0
    %49 = vmatpush1.msra.mxu0 %v34
    %50 = vmatprep.subr.mxu0 0.0
    %51 = vmatpush1.msra.mxu0 0.0
    %52 = vmatprep.subr.mxu0 0.0
    %53 = vmatpush1.msra.mxu0 0.0
    %54 = vmatprep.subr.mxu0 0.0
    %55 = vmatpush1.msra.mxu0 0.0
    %56 = vmatprep.subr.mxu0 0.0
    %57 = vmatpush1.msra.mxu0 0.0
    %58 = vmatprep.subr.mxu0 0.0
    %59 = vmatpush1.msra.mxu0 0.0
    %60 = vmatprep.subr.mxu0 0.0
    %61 = vmatpush1.msra.mxu0 0.0
    %62 = vmatprep.subr.mxu0 0.0
    %63 = vmatpush1.msra.mxu0 0.0
    %64 = vmatprep.subr.mxu0 0.0
    %65 = vmatpush1.msra.mxu0 0.0
    %66 = vmatprep.subr.mxu0 0.0
    %67 = vmatpush1.msra.mxu0 0.0
    %68 = vmatprep.subr.mxu0 0.0
    %69 = vmatpush1.msra.mxu0 0.0
    %70 = vmatprep.subr.mxu0 0.0
    %71 = vmatpush1.msra.mxu0 0.0
    %72 = vmatprep.subr.mxu0 0.0
    %73 = vmatpush1.msra.mxu0 0.0
    %74 = vmatprep.subr.mxu0 0.0
    %75 = vmatpush1.msra.mxu0 0.0
    %76 = vmatprep.subr.mxu0 0.0
    %77 = vmatpush1.msra.mxu0 0.0
    %78 = vmatprep.subr.mxu0 0.0
    %79 = vmatpush1.msra.mxu0 0.0
    %80 = vmatprep.subr.mxu0 0.0
    %81 = vmatpush1.msra.mxu0 0.0
    %82 = vmatprep.subr.mxu0 0.0
    %83 = vmatpush1.msra.mxu0 0.0
    %84 = vmatprep.subr.mxu0 0.0
    %85 = vmatpush1.msra.mxu0 0.0
    %86 = vmatprep.subr.mxu0 0.0
    %87 = vmatpush1.msra.mxu0 0.0
    %88 = vmatprep.subr.mxu0 0.0
    %89 = vmatpush1.msra.mxu0 0.0
    %90 = vmatprep.subr.mxu0 0.0
    %91 = vmatpush1.msra.mxu0 0.0
    %92 = vmatprep.subr.mxu0 0.0
    %93 = vmatpush1.msra.mxu0 0.0
    %94 = vmatprep.subr.mxu0 0.0
    %95 = vmatpush1.msra.mxu0 0.0
    %96 = vmatprep.subr.mxu0 0.0
    %97 = vmatpush1.msra.mxu0 0.0
    %98 = vmatprep.subr.mxu0 0.0
    %99 = vmatpush1.msra.mxu0 0.0
    %100 = vmatprep.subr.mxu0 0.0
    %101 = vmatpush1.msra.mxu0 0.0
    %102 = vmatprep.subr.mxu0 0.0
    %103 = vmatpush1.msra.mxu0 0.0
    %104 = vmatprep.subr.mxu0 0.0
    %105 = vmatpush1.msra.mxu0 0.0
    %106 = vmatprep.mubr.f32.mxu0 0.0
    %107 = vmatmul.mubr.f32.gmra.mrb[0].mxu0 %v40
    %v108 = vpop.f32.mrb[0].mxu0
    %v109 = vadd.f32 0.0, %v108
    %v110 = vpop.f32.mrb[0].mxu0
    %111 = vdwg.mxu0
    %v112 = vadd.f32 %v37, %v109
    %v113 = vxor.u32 %v112, 2147483648
    %v114 = vmul.f32 %v113, 1.442695
    %v115 = vpow.pop %v114
    %v116 = vadd.f32 %v115, 1.0
    %v117 = vrcp.pop %v116
    %v118 = vmul.f32 1.0, %v117
    %v119 = vtanh.pop %v112
    %121 = vrot.lane.b32.xlu0 %v36, 32
    %v122 = vpop.permute.xlu0 %121
    %v124 = vmul.f32 %v118, %v122
    %126 = vrot.lane.b32.xlu0 %v119, 64
    %v127 = vpop.permute.xlu0 %126
    %v129 = vmul.f32 %v118, %v127
    %131 = vrot.lane.b32.xlu0 %v129, 32
    %v132 = vpop.permute.xlu0 %131
    %v134 = vadd.f32 %v124, %v132
    %v135 = vtanh.pop %v134
    %137 = vrot.lane.b32.xlu0 %v135, 64
    %v138 = vpop.permute.xlu0 %137
    %v140 = vmul.f32 %v118, %v138
    %142 = vrot.lane.b32.xlu0 %v140, 32
    %v143 = vpop.permute.xlu0 %142
    %vm145 = vcmask 254976
    %146 = vst.msk [vmem:[%s4] sm:$0x3] %vm145, %v143
    %s147 = scalar_lea.vmem %s0, 2
    %v148 = vld [vmem:[%s147] sm:$0x3]
    %v149 = vsel %vm38, %v143, 0
    %151 = vmatprep.subr.mxu0 0.0
    %152 = vmatpush1.msra.mxu0 %v31
    %153 = vmatprep.subr.mxu0 0.0
    %154 = vmatpush1.msra.mxu0 %v32
    %155 = vmatprep.subr.mxu0 0.0
    %156 = vmatpush1.msra.mxu0 %v33
    %157 = vmatprep.subr.mxu0 0.0
    %158 = vmatpush1.msra.mxu0 %v34
    %159 = vmatprep.subr.mxu0 0.0
    %160 = vmatpush1.msra.mxu0 0.0
    %161 = vmatprep.subr.mxu0 0.0
    %162 = vmatpush1.msra.mxu0 0.0
    %163 = vmatprep.subr.mxu0 0.0
    %164 = vmatpush1.msra.mxu0 0.0
    %165 = vmatprep.subr.mxu0 0.0
    %166 = vmatpush1.msra.mxu0 0.0
    %167 = vmatprep.subr.mxu0 0.0
    %168 = vmatpush1.msra.mxu0 0.0
    %169 = vmatprep.subr.mxu0 0.0
    %170 = vmatpush1.msra.mxu0 0.0
    %171 = vmatprep.subr.mxu0 0.0
    %172 = vmatpush1.msra.mxu0 0.0
    %173 = vmatprep.subr.mxu0 0.0
    %174 = vmatpush1.msra.mxu0 0.0
    %175 = vmatprep.subr.mxu0 0.0
    %176 = vmatpush1.msra.mxu0 0.0
    %177 = vmatprep.subr.mxu0 0.0
    %178 = vmatpush1.msra.mxu0 0.0
    %179 = vmatprep.subr.mxu0 0.0
    %180 = vmatpush1.msra.mxu0 0.0
    %181 = vmatprep.subr.mxu0 0.0
    %182 = vmatpush1.msra.mxu0 0.0
    %183 = vmatprep.subr.mxu0 0.0
    %184 = vmatpush1.msra.mxu0 0.0
    %185 = vmatprep.subr.mxu0 0.0
    %186 = vmatpush1.msra.mxu0 0.0
    %187 = vmatprep.subr.mxu0 0.0
    %188 = vmatpush1.msra.mxu0 0.0
    %189 = vmatprep.subr.mxu0 0.0
    %190 = vmatpush1.msra.mxu0 0.0
    %191 = vmatprep.subr.mxu0 0.0
    %192 = vmatpush1.msra.mxu0 0.0
    %193 = vmatprep.subr.mxu0 0.0
    %194 = vmatpush1.msra.mxu0 0.0
    %195 = vmatprep.subr.mxu0 0.0
    %196 = vmatpush1.msra.mxu0 0.0
    %197 = vmatprep.subr.mxu0 0.0
    %198 = vmatpush1.msra.mxu0 0.0
    %199 = vmatprep.subr.mxu0 0.0
    %200 = vmatpush1.msra.mxu0 0.0
    %201 = vmatprep.subr.mxu0 0.0
    %202 = vmatpush1.msra.mxu0 0.0
    %203 = vmatprep.subr.mxu0 0.0
    %204 = vmatpush1.msra.mxu0 0.0
    %205 = vmatprep.subr.mxu0 0.0
    %206 = vmatpush1.msra.mxu0 0.0
    %207 = vmatprep.subr.mxu0 0.0
    %208 = vmatpush1.msra.mxu0 0.0
    %209 = vmatprep.subr.mxu0 0.0
    %210 = vmatpush1.msra.mxu0 0.0
    %211 = vmatprep.subr.mxu0 0.0
    %212 = vmatpush1.msra.mxu0 0.0
    %213 = vmatprep.subr.mxu0 0.0
    %214 = vmatpush1.msra.mxu0 0.0
    %215 = vmatprep.mubr.f32.mxu0 0.0
    %216 = vmatmul.mubr.f32.gmra.mrb[0].mxu0 %v149
    %v217 = vpop.f32.mrb[0].mxu0
    %v218 = vadd.f32 0.0, %v217
    %v219 = vpop.f32.mrb[0].mxu0
    %220 = vdwg.mxu0
    %v221 = vadd.f32 %v148, %v218
    %v222 = vxor.u32 %v221, 2147483648
    %v223 = vmul.f32 %v222, 1.442695
    %v224 = vpow.pop %v223
    %v225 = vadd.f32 %v224, 1.0
    %v226 = vrcp.pop %v225
    %v227 = vmul.f32 1.0, %v226
    %v228 = vtanh.pop %v221
    %v229 = vmul.f32 %v227, %v134
    %231 = vrot.lane.b32.xlu0 %v228, 64
    %v232 = vpop.permute.xlu0 %231
    %v234 = vmul.f32 %v227, %v232
    %236 = vrot.lane.b32.xlu0 %v234, 32
    %v237 = vpop.permute.xlu0 %236
    %v239 = vadd.f32 %v229, %v237
    %v240 = vtanh.pop %v239
    %242 = vrot.lane.b32.xlu0 %v240, 64
    %v243 = vpop.permute.xlu0 %242
    %v245 = vmul.f32 %v227, %v243
    %247 = vrot.lane.b32.xlu0 %v245, 32
    %v248 = vpop.permute.xlu0 %247
    %s250 = scalar_lea.vmem %s4, 2
    %251 = vst.msk [vmem:[%s250] sm:$0x3] %vm145, %v248
    %s252 = scalar_lea.vmem %s0, 4
    %v253 = vld [vmem:[%s252] sm:$0x3]
    %v254 = vsel %vm38, %v248, 0
    %256 = vmatprep.subr.mxu0 0.0
    %257 = vmatpush1.msra.mxu0 %v31
    %258 = vmatprep.subr.mxu0 0.0
    %259 = vmatpush1.msra.mxu0 %v32
    %260 = vmatprep.subr.mxu0 0.0
    %261 = vmatpush1.msra.mxu0 %v33
    %262 = vmatprep.subr.mxu0 0.0
    %263 = vmatpush1.msra.mxu0 %v34
    %264 = vmatprep.subr.mxu0 0.0
    %265 = vmatpush1.msra.mxu0 0.0
    %266 = vmatprep.subr.mxu0 0.0
    %267 = vmatpush1.msra.mxu0 0.0
    %268 = vmatprep.subr.mxu0 0.0
    %269 = vmatpush1.msra.mxu0 0.0
    %270 = vmatprep.subr.mxu0 0.0
    %271 = vmatpush1.msra.mxu0 0.0
    %272 = vmatprep.subr.mxu0 0.0
    %273 = vmatpush1.msra.mxu0 0.0
    %274 = vmatprep.subr.mxu0 0.0
    %275 = vmatpush1.msra.mxu0 0.0
    %276 = vmatprep.subr.mxu0 0.0
    %277 = vmatpush1.msra.mxu0 0.0
    %278 = vmatprep.subr.mxu0 0.0
    %279 = vmatpush1.msra.mxu0 0.0
    %280 = vmatprep.subr.mxu0 0.0
    %281 = vmatpush1.msra.mxu0 0.0
    %282 = vmatprep.subr.mxu0 0.0
    %283 = vmatpush1.msra.mxu0 0.0
    %284 = vmatprep.subr.mxu0 0.0
    %285 = vmatpush1.msra.mxu0 0.0
    %286 = vmatprep.subr.mxu0 0.0
    %287 = vmatpush1.msra.mxu0 0.0
    %288 = vmatprep.subr.mxu0 0.0
    %289 = vmatpush1.msra.mxu0 0.0
    %290 = vmatprep.subr.mxu0 0.0
    %291 = vmatpush1.msra.mxu0 0.0
    %292 = vmatprep.subr.mxu0 0.0
    %293 = vmatpush1.msra.mxu0 0.0
    %294 = vmatprep.subr.mxu0 0.0
    %295 = vmatpush1.msra.mxu0 0.0
    %296 = vmatprep.subr.mxu0 0.0
    %297 = vmatpush1.msra.mxu0 0.0
    %298 = vmatprep.subr.mxu0 0.0
    %299 = vmatpush1.msra.mxu0 0.0
    %300 = vmatprep.subr.mxu0 0.0
    %301 = vmatpush1.msra.mxu0 0.0
    %302 = vmatprep.subr.mxu0 0.0
    %303 = vmatpush1.msra.mxu0 0.0
    %304 = vmatprep.subr.mxu0 0.0
    %305 = vmatpush1.msra.mxu0 0.0
    %306 = vmatprep.subr.mxu0 0.0
    %307 = vmatpush1.msra.mxu0 0.0
    %308 = vmatprep.subr.mxu0 0.0
    %309 = vmatpush1.msra.mxu0 0.0
    %310 = vmatprep.subr.mxu0 0.0
    %311 = vmatpush1.msra.mxu0 0.0
    %312 = vmatprep.subr.mxu0 0.0
    %313 = vmatpush1.msra.mxu0 0.0
    %314 = vmatprep.subr.mxu0 0.0
    %315 = vmatpush1.msra.mxu0 0.0
    %316 = vmatprep.subr.mxu0 0.0
    %317 = vmatpush1.msra.mxu0 0.0
    %318 = vmatprep.subr.mxu0 0.0
    %319 = vmatpush1.msra.mxu0 0.0
    %320 = vmatprep.mubr.f32.mxu0 0.0
    %321 = vmatmul.mubr.f32.gmra.mrb[0].mxu0 %v254
    %v322 = vpop.f32.mrb[0].mxu0
    %v323 = vadd.f32 0.0, %v322
    %v324 = vpop.f32.mrb[0].mxu0
    %325 = vdwg.mxu0
    %v326 = vadd.f32 %v253, %v323
    %v327 = vxor.u32 %v326, 2147483648
    %v328 = vmul.f32 %v327, 1.442695
    %v329 = vpow.pop %v328
    %v330 = vadd.f32 %v329, 1.0
    %v331 = vrcp.pop %v330
    %v332 = vmul.f32 1.0, %v331
    %v333 = vtanh.pop %v326
    %v334 = vmul.f32 %v332, %v239
    %336 = vrot.lane.b32.xlu0 %v333, 64
    %v337 = vpop.permute.xlu0 %336
    %v339 = vmul.f32 %v332, %v337
    %341 = vrot.lane.b32.xlu0 %v339, 32
    %v342 = vpop.permute.xlu0 %341
    %v344 = vadd.f32 %v334, %v342
    %v345 = vtanh.pop %v344
    %347 = vrot.lane.b32.xlu0 %v345, 64
    %v348 = vpop.permute.xlu0 %347
    %v350 = vmul.f32 %v332, %v348
    %352 = vrot.lane.b32.xlu0 %v350, 32
    %v353 = vpop.permute.xlu0 %352
    %s355 = scalar_lea.vmem %s4, 4
    %356 = vst.msk [vmem:[%s355] sm:$0x3] %vm145, %v353
    %s357 = scalar_lea.vmem %s0, 6
    %v358 = vld [vmem:[%s357] sm:$0x3]
    %v359 = vsel %vm38, %v353, 0
    %361 = vmatprep.subr.mxu0 0.0
    %362 = vmatpush1.msra.mxu0 %v31
    %363 = vmatprep.subr.mxu0 0.0
    %364 = vmatpush1.msra.mxu0 %v32
    %365 = vmatprep.subr.mxu0 0.0
    %366 = vmatpush1.msra.mxu0 %v33
    %367 = vmatprep.subr.mxu0 0.0
    %368 = vmatpush1.msra.mxu0 %v34
    %369 = vmatprep.subr.mxu0 0.0
    %370 = vmatpush1.msra.mxu0 0.0
    %371 = vmatprep.subr.mxu0 0.0
    %372 = vmatpush1.msra.mxu0 0.0
    %373 = vmatprep.subr.mxu0 0.0
    %374 = vmatpush1.msra.mxu0 0.0
    %375 = vmatprep.subr.mxu0 0.0
    %376 = vmatpush1.msra.mxu0 0.0
    %377 = vmatprep.subr.mxu0 0.0
    %378 = vmatpush1.msra.mxu0 0.0
    %379 = vmatprep.subr.mxu0 0.0
    %380 = vmatpush1.msra.mxu0 0.0
    %381 = vmatprep.subr.mxu0 0.0
    %382 = vmatpush1.msra.mxu0 0.0
    %383 = vmatprep.subr.mxu0 0.0
    %384 = vmatpush1.msra.mxu0 0.0
    %385 = vmatprep.subr.mxu0 0.0
    %386 = vmatpush1.msra.mxu0 0.0
    %387 = vmatprep.subr.mxu0 0.0
    %388 = vmatpush1.msra.mxu0 0.0
    %389 = vmatprep.subr.mxu0 0.0
    %390 = vmatpush1.msra.mxu0 0.0
    %391 = vmatprep.subr.mxu0 0.0
    %392 = vmatpush1.msra.mxu0 0.0
    %393 = vmatprep.subr.mxu0 0.0
    %394 = vmatpush1.msra.mxu0 0.0
    %395 = vmatprep.subr.mxu0 0.0
    %396 = vmatpush1.msra.mxu0 0.0
    %397 = vmatprep.subr.mxu0 0.0
    %398 = vmatpush1.msra.mxu0 0.0
    %399 = vmatprep.subr.mxu0 0.0
    %400 = vmatpush1.msra.mxu0 0.0
    %401 = vmatprep.subr.mxu0 0.0
    %402 = vmatpush1.msra.mxu0 0.0
    %403 = vmatprep.subr.mxu0 0.0
    %404 = vmatpush1.msra.mxu0 0.0
    %405 = vmatprep.subr.mxu0 0.0
    %406 = vmatpush1.msra.mxu0 0.0
    %407 = vmatprep.subr.mxu0 0.0
    %408 = vmatpush1.msra.mxu0 0.0
    %409 = vmatprep.subr.mxu0 0.0
    %410 = vmatpush1.msra.mxu0 0.0
    %411 = vmatprep.subr.mxu0 0.0
    %412 = vmatpush1.msra.mxu0 0.0
    %413 = vmatprep.subr.mxu0 0.0
    %414 = vmatpush1.msra.mxu0 0.0
    %415 = vmatprep.subr.mxu0 0.0
    %416 = vmatpush1.msra.mxu0 0.0
    %417 = vmatprep.subr.mxu0 0.0
    %418 = vmatpush1.msra.mxu0 0.0
    %419 = vmatprep.subr.mxu0 0.0
    %420 = vmatpush1.msra.mxu0 0.0
    %421 = vmatprep.subr.mxu0 0.0
    %422 = vmatpush1.msra.mxu0 0.0
    %423 = vmatprep.subr.mxu0 0.0
    %424 = vmatpush1.msra.mxu0 0.0
    %425 = vmatprep.mubr.f32.mxu0 0.0
    %426 = vmatmul.mubr.f32.gmra.mrb[0].mxu0 %v359
    %v427 = vpop.f32.mrb[0].mxu0
    %v428 = vadd.f32 0.0, %v427
    %v429 = vpop.f32.mrb[0].mxu0
    %430 = vdwg.mxu0
    %v431 = vadd.f32 %v358, %v428
    %v432 = vxor.u32 %v431, 2147483648
    %v433 = vmul.f32 %v432, 1.442695
    %v434 = vpow.pop %v433
    %v435 = vadd.f32 %v434, 1.0
    %v436 = vrcp.pop %v435
    %v437 = vmul.f32 1.0, %v436
    %v438 = vtanh.pop %v431
    %v439 = vmul.f32 %v437, %v344
    %441 = vrot.lane.b32.xlu0 %v438, 64
    %v442 = vpop.permute.xlu0 %441
    %v444 = vmul.f32 %v437, %v442
    %446 = vrot.lane.b32.xlu0 %v444, 32
    %v447 = vpop.permute.xlu0 %446
    %v449 = vadd.f32 %v439, %v447
    %v450 = vtanh.pop %v449
    %452 = vrot.lane.b32.xlu0 %v450, 64
    %v453 = vpop.permute.xlu0 %452
    %v455 = vmul.f32 %v437, %v453
    %457 = vrot.lane.b32.xlu0 %v455, 32
    %v458 = vpop.permute.xlu0 %457
    %s460 = scalar_lea.vmem %s4, 6
    %461 = vst.msk [vmem:[%s460] sm:$0x3] %vm145, %v458
    %s462 = scalar_lea.vmem %s0, 8
    %v463 = vld [vmem:[%s462] sm:$0x3]
    %v464 = vsel %vm38, %v458, 0
    %466 = vmatprep.subr.mxu0 0.0
    %467 = vmatpush1.msra.mxu0 %v31
    %468 = vmatprep.subr.mxu0 0.0
    %469 = vmatpush1.msra.mxu0 %v32
    %470 = vmatprep.subr.mxu0 0.0
    %471 = vmatpush1.msra.mxu0 %v33
    %472 = vmatprep.subr.mxu0 0.0
    %473 = vmatpush1.msra.mxu0 %v34
    %474 = vmatprep.subr.mxu0 0.0
    %475 = vmatpush1.msra.mxu0 0.0
    %476 = vmatprep.subr.mxu0 0.0
    %477 = vmatpush1.msra.mxu0 0.0
    %478 = vmatprep.subr.mxu0 0.0
    %479 = vmatpush1.msra.mxu0 0.0
    %480 = vmatprep.subr.mxu0 0.0
    %481 = vmatpush1.msra.mxu0 0.0
    %482 = vmatprep.subr.mxu0 0.0
    %483 = vmatpush1.msra.mxu0 0.0
    %484 = vmatprep.subr.mxu0 0.0
    %485 = vmatpush1.msra.mxu0 0.0
    %486 = vmatprep.subr.mxu0 0.0
    %487 = vmatpush1.msra.mxu0 0.0
    %488 = vmatprep.subr.mxu0 0.0
    %489 = vmatpush1.msra.mxu0 0.0
    %490 = vmatprep.subr.mxu0 0.0
    %491 = vmatpush1.msra.mxu0 0.0
    %492 = vmatprep.subr.mxu0 0.0
    %493 = vmatpush1.msra.mxu0 0.0
    %494 = vmatprep.subr.mxu0 0.0
    %495 = vmatpush1.msra.mxu0 0.0
    %496 = vmatprep.subr.mxu0 0.0
    %497 = vmatpush1.msra.mxu0 0.0
    %498 = vmatprep.subr.mxu0 0.0
    %499 = vmatpush1.msra.mxu0 0.0
    %500 = vmatprep.subr.mxu0 0.0
    %501 = vmatpush1.msra.mxu0 0.0
    %502 = vmatprep.subr.mxu0 0.0
    %503 = vmatpush1.msra.mxu0 0.0
    %504 = vmatprep.subr.mxu0 0.0
    %505 = vmatpush1.msra.mxu0 0.0
    %506 = vmatprep.subr.mxu0 0.0
    %507 = vmatpush1.msra.mxu0 0.0
    %508 = vmatprep.subr.mxu0 0.0
    %509 = vmatpush1.msra.mxu0 0.0
    %510 = vmatprep.subr.mxu0 0.0
    %511 = vmatpush1.msra.mxu0 0.0
    %512 = vmatprep.subr.mxu0 0.0
    %513 = vmatpush1.msra.mxu0 0.0
    %514 = vmatprep.subr.mxu0 0.0
    %515 = vmatpush1.msra.mxu0 0.0
    %516 = vmatprep.subr.mxu0 0.0
    %517 = vmatpush1.msra.mxu0 0.0
    %518 = vmatprep.subr.mxu0 0.0
    %519 = vmatpush1.msra.mxu0 0.0
    %520 = vmatprep.subr.mxu0 0.0
    %521 = vmatpush1.msra.mxu0 0.0
    %522 = vmatprep.subr.mxu0 0.0
    %523 = vmatpush1.msra.mxu0 0.0
    %524 = vmatprep.subr.mxu0 0.0
    %525 = vmatpush1.msra.mxu0 0.0
    %526 = vmatprep.subr.mxu0 0.0
    %527 = vmatpush1.msra.mxu0 0.0
    %528 = vmatprep.subr.mxu0 0.0
    %529 = vmatpush1.msra.mxu0 0.0
    %530 = vmatprep.mubr.f32.mxu0 0.0
    %531 = vmatmul.mubr.f32.gmra.mrb[0].mxu0 %v464
    %v532 = vpop.f32.mrb[0].mxu0
    %v533 = vadd.f32 0.0, %v532
    %v534 = vpop.f32.mrb[0].mxu0
    %535 = vdwg.mxu0
    %v536 = vadd.f32 %v463, %v533
    %v537 = vxor.u32 %v536, 2147483648
    %v538 = vmul.f32 %v537, 1.442695
    %v539 = vpow.pop %v538
    %v540 = vadd.f32 %v539, 1.0
    %v541 = vrcp.pop %v540
    %v542 = vmul.f32 1.0, %v541
    %v543 = vtanh.pop %v536
    %v544 = vmul.f32 %v542, %v449
    %546 = vrot.lane.b32.xlu0 %v543, 64
    %v547 = vpop.permute.xlu0 %546
    %v549 = vmul.f32 %v542, %v547
    %551 = vrot.lane.b32.xlu0 %v549, 32
    %v552 = vpop.permute.xlu0 %551
    %v554 = vadd.f32 %v544, %v552
    %v555 = vtanh.pop %v554
    %557 = vrot.lane.b32.xlu0 %v555, 64
    %v558 = vpop.permute.xlu0 %557
    %v560 = vmul.f32 %v542, %v558
    %562 = vrot.lane.b32.xlu0 %v560, 32
    %v563 = vpop.permute.xlu0 %562
    %s565 = scalar_lea.vmem %s4, 8
    %566 = vst.msk [vmem:[%s565] sm:$0x3] %vm145, %v563
    %s567 = scalar_lea.vmem %s0, 10
    %v568 = vld [vmem:[%s567] sm:$0x3]
    %v569 = vsel %vm38, %v563, 0
    %571 = vmatprep.subr.mxu0 0.0
    %572 = vmatpush1.msra.mxu0 %v31
    %573 = vmatprep.subr.mxu0 0.0
    %574 = vmatpush1.msra.mxu0 %v32
    %575 = vmatprep.subr.mxu0 0.0
    %576 = vmatpush1.msra.mxu0 %v33
    %577 = vmatprep.subr.mxu0 0.0
    %578 = vmatpush1.msra.mxu0 %v34
    %579 = vmatprep.subr.mxu0 0.0
    %580 = vmatpush1.msra.mxu0 0.0
    %581 = vmatprep.subr.mxu0 0.0
    %582 = vmatpush1.msra.mxu0 0.0
    %583 = vmatprep.subr.mxu0 0.0
    %584 = vmatpush1.msra.mxu0 0.0
    %585 = vmatprep.subr.mxu0 0.0
    %586 = vmatpush1.msra.mxu0 0.0
    %587 = vmatprep.subr.mxu0 0.0
    %588 = vmatpush1.msra.mxu0 0.0
    %589 = vmatprep.subr.mxu0 0.0
    %590 = vmatpush1.msra.mxu0 0.0
    %591 = vmatprep.subr.mxu0 0.0
    %592 = vmatpush1.msra.mxu0 0.0
    %593 = vmatprep.subr.mxu0 0.0
    %594 = vmatpush1.msra.mxu0 0.0
    %595 = vmatprep.subr.mxu0 0.0
    %596 = vmatpush1.msra.mxu0 0.0
    %597 = vmatprep.subr.mxu0 0.0
    %598 = vmatpush1.msra.mxu0 0.0
    %599 = vmatprep.subr.mxu0 0.0
    %600 = vmatpush1.msra.mxu0 0.0
    %601 = vmatprep.subr.mxu0 0.0
    %602 = vmatpush1.msra.mxu0 0.0
    %603 = vmatprep.subr.mxu0 0.0
    %604 = vmatpush1.msra.mxu0 0.0
    %605 = vmatprep.subr.mxu0 0.0
    %606 = vmatpush1.msra.mxu0 0.0
    %607 = vmatprep.subr.mxu0 0.0
    %608 = vmatpush1.msra.mxu0 0.0
    %609 = vmatprep.subr.mxu0 0.0
    %610 = vmatpush1.msra.mxu0 0.0
    %611 = vmatprep.subr.mxu0 0.0
    %612 = vmatpush1.msra.mxu0 0.0
    %613 = vmatprep.subr.mxu0 0.0
    %614 = vmatpush1.msra.mxu0 0.0
    %615 = vmatprep.subr.mxu0 0.0
    %616 = vmatpush1.msra.mxu0 0.0
    %617 = vmatprep.subr.mxu0 0.0
    %618 = vmatpush1.msra.mxu0 0.0
    %619 = vmatprep.subr.mxu0 0.0
    %620 = vmatpush1.msra.mxu0 0.0
    %621 = vmatprep.subr.mxu0 0.0
    %622 = vmatpush1.msra.mxu0 0.0
    %623 = vmatprep.subr.mxu0 0.0
    %624 = vmatpush1.msra.mxu0 0.0
    %625 = vmatprep.subr.mxu0 0.0
    %626 = vmatpush1.msra.mxu0 0.0
    %627 = vmatprep.subr.mxu0 0.0
    %628 = vmatpush1.msra.mxu0 0.0
    %629 = vmatprep.subr.mxu0 0.0
    %630 = vmatpush1.msra.mxu0 0.0
    %631 = vmatprep.subr.mxu0 0.0
    %632 = vmatpush1.msra.mxu0 0.0
    %633 = vmatprep.subr.mxu0 0.0
    %634 = vmatpush1.msra.mxu0 0.0
    %635 = vmatprep.mubr.f32.mxu0 0.0
    %636 = vmatmul.mubr.f32.gmra.mrb[0].mxu0 %v569
    %v637 = vpop.f32.mrb[0].mxu0
    %v638 = vadd.f32 0.0, %v637
    %v639 = vpop.f32.mrb[0].mxu0
    %640 = vdwg.mxu0
    %v641 = vadd.f32 %v568, %v638
    %v642 = vxor.u32 %v641, 2147483648
    %v643 = vmul.f32 %v642, 1.442695
    %v644 = vpow.pop %v643
    %v645 = vadd.f32 %v644, 1.0
    %v646 = vrcp.pop %v645
    %v647 = vmul.f32 1.0, %v646
    %v648 = vtanh.pop %v641
    %v649 = vmul.f32 %v647, %v554
    %651 = vrot.lane.b32.xlu0 %v648, 64
    %v652 = vpop.permute.xlu0 %651
    %v654 = vmul.f32 %v647, %v652
    %656 = vrot.lane.b32.xlu0 %v654, 32
    %v657 = vpop.permute.xlu0 %656
    %v659 = vadd.f32 %v649, %v657
    %v660 = vtanh.pop %v659
    %662 = vrot.lane.b32.xlu0 %v660, 64
    %v663 = vpop.permute.xlu0 %662
    %v665 = vmul.f32 %v647, %v663
    %667 = vrot.lane.b32.xlu0 %v665, 32
    %v668 = vpop.permute.xlu0 %667
    %s670 = scalar_lea.vmem %s4, 10
    %671 = vst.msk [vmem:[%s670] sm:$0x3] %vm145, %v668
    %s672 = scalar_lea.vmem %s0, 12
    %v673 = vld [vmem:[%s672] sm:$0x3]
    %v674 = vsel %vm38, %v668, 0
    %676 = vmatprep.subr.mxu0 0.0
    %677 = vmatpush1.msra.mxu0 %v31
    %678 = vmatprep.subr.mxu0 0.0
    %679 = vmatpush1.msra.mxu0 %v32
    %680 = vmatprep.subr.mxu0 0.0
    %681 = vmatpush1.msra.mxu0 %v33
    %682 = vmatprep.subr.mxu0 0.0
    %683 = vmatpush1.msra.mxu0 %v34
    %684 = vmatprep.subr.mxu0 0.0
    %685 = vmatpush1.msra.mxu0 0.0
    %686 = vmatprep.subr.mxu0 0.0
    %687 = vmatpush1.msra.mxu0 0.0
    %688 = vmatprep.subr.mxu0 0.0
    %689 = vmatpush1.msra.mxu0 0.0
    %690 = vmatprep.subr.mxu0 0.0
    %691 = vmatpush1.msra.mxu0 0.0
    %692 = vmatprep.subr.mxu0 0.0
    %693 = vmatpush1.msra.mxu0 0.0
    %694 = vmatprep.subr.mxu0 0.0
    %695 = vmatpush1.msra.mxu0 0.0
    %696 = vmatprep.subr.mxu0 0.0
    %697 = vmatpush1.msra.mxu0 0.0
    %698 = vmatprep.subr.mxu0 0.0
    %699 = vmatpush1.msra.mxu0 0.0
    %700 = vmatprep.subr.mxu0 0.0
    %701 = vmatpush1.msra.mxu0 0.0
    %702 = vmatprep.subr.mxu0 0.0
    %703 = vmatpush1.msra.mxu0 0.0
    %704 = vmatprep.subr.mxu0 0.0
    %705 = vmatpush1.msra.mxu0 0.0
    %706 = vmatprep.subr.mxu0 0.0
    %707 = vmatpush1.msra.mxu0 0.0
    %708 = vmatprep.subr.mxu0 0.0
    %709 = vmatpush1.msra.mxu0 0.0
    %710 = vmatprep.subr.mxu0 0.0
    %711 = vmatpush1.msra.mxu0 0.0
    %712 = vmatprep.subr.mxu0 0.0
    %713 = vmatpush1.msra.mxu0 0.0
    %714 = vmatprep.subr.mxu0 0.0
    %715 = vmatpush1.msra.mxu0 0.0
    %716 = vmatprep.subr.mxu0 0.0
    %717 = vmatpush1.msra.mxu0 0.0
    %718 = vmatprep.subr.mxu0 0.0
    %719 = vmatpush1.msra.mxu0 0.0
    %720 = vmatprep.subr.mxu0 0.0
    %721 = vmatpush1.msra.mxu0 0.0
    %722 = vmatprep.subr.mxu0 0.0
    %723 = vmatpush1.msra.mxu0 0.0
    %724 = vmatprep.subr.mxu0 0.0
    %725 = vmatpush1.msra.mxu0 0.0
    %726 = vmatprep.subr.mxu0 0.0
    %727 = vmatpush1.msra.mxu0 0.0
    %728 = vmatprep.subr.mxu0 0.0
    %729 = vmatpush1.msra.mxu0 0.0
    %730 = vmatprep.subr.mxu0 0.0
    %731 = vmatpush1.msra.mxu0 0.0
    %732 = vmatprep.subr.mxu0 0.0
    %733 = vmatpush1.msra.mxu0 0.0
    %734 = vmatprep.subr.mxu0 0.0
    %735 = vmatpush1.msra.mxu0 0.0
    %736 = vmatprep.subr.mxu0 0.0
    %737 = vmatpush1.msra.mxu0 0.0
    %738 = vmatprep.subr.mxu0 0.0
    %739 = vmatpush1.msra.mxu0 0.0
    %740 = vmatprep.mubr.f32.mxu0 0.0
    %741 = vmatmul.mubr.f32.gmra.mrb[0].mxu0 %v674
    %v742 = vpop.f32.mrb[0].mxu0
    %v743 = vadd.f32 0.0, %v742
    %v744 = vpop.f32.mrb[0].mxu0
    %745 = vdwg.mxu0
    %v746 = vadd.f32 %v673, %v743
    %v747 = vxor.u32 %v746, 2147483648
    %v748 = vmul.f32 %v747, 1.442695
    %v749 = vpow.pop %v748
    %v750 = vadd.f32 %v749, 1.0
    %v751 = vrcp.pop %v750
    %v752 = vmul.f32 1.0, %v751
    %v753 = vtanh.pop %v746
    %v754 = vmul.f32 %v752, %v659
    %756 = vrot.lane.b32.xlu0 %v753, 64
    %v757 = vpop.permute.xlu0 %756
    %v759 = vmul.f32 %v752, %v757
    %761 = vrot.lane.b32.xlu0 %v759, 32
    %v762 = vpop.permute.xlu0 %761
    %v764 = vadd.f32 %v754, %v762
    %v765 = vtanh.pop %v764
    %767 = vrot.lane.b32.xlu0 %v765, 64
    %v768 = vpop.permute.xlu0 %767
    %v770 = vmul.f32 %v752, %v768
    %772 = vrot.lane.b32.xlu0 %v770, 32
    %v773 = vpop.permute.xlu0 %772
    %s775 = scalar_lea.vmem %s4, 12
    %776 = vst.msk [vmem:[%s775] sm:$0x3] %vm145, %v773
    %s777 = scalar_lea.vmem %s0, 14
    %v778 = vld [vmem:[%s777] sm:$0x3]
    %v779 = vsel %vm38, %v773, 0
    %781 = vmatprep.subr.mxu0 0.0
    %782 = vmatpush1.msra.mxu0 %v31
    %783 = vmatprep.subr.mxu0 0.0
    %784 = vmatpush1.msra.mxu0 %v32
    %785 = vmatprep.subr.mxu0 0.0
    %786 = vmatpush1.msra.mxu0 %v33
    %787 = vmatprep.subr.mxu0 0.0
    %788 = vmatpush1.msra.mxu0 %v34
    %789 = vmatprep.subr.mxu0 0.0
    %790 = vmatpush1.msra.mxu0 0.0
    %791 = vmatprep.subr.mxu0 0.0
    %792 = vmatpush1.msra.mxu0 0.0
    %793 = vmatprep.subr.mxu0 0.0
    %794 = vmatpush1.msra.mxu0 0.0
    %795 = vmatprep.subr.mxu0 0.0
    %796 = vmatpush1.msra.mxu0 0.0
    %797 = vmatprep.subr.mxu0 0.0
    %798 = vmatpush1.msra.mxu0 0.0
    %799 = vmatprep.subr.mxu0 0.0
    %800 = vmatpush1.msra.mxu0 0.0
    %801 = vmatprep.subr.mxu0 0.0
    %802 = vmatpush1.msra.mxu0 0.0
    %803 = vmatprep.subr.mxu0 0.0
    %804 = vmatpush1.msra.mxu0 0.0
    %805 = vmatprep.subr.mxu0 0.0
    %806 = vmatpush1.msra.mxu0 0.0
    %807 = vmatprep.subr.mxu0 0.0
    %808 = vmatpush1.msra.mxu0 0.0
    %809 = vmatprep.subr.mxu0 0.0
    %810 = vmatpush1.msra.mxu0 0.0
    %811 = vmatprep.subr.mxu0 0.0
    %812 = vmatpush1.msra.mxu0 0.0
    %813 = vmatprep.subr.mxu0 0.0
    %814 = vmatpush1.msra.mxu0 0.0
    %815 = vmatprep.subr.mxu0 0.0
    %816 = vmatpush1.msra.mxu0 0.0
    %817 = vmatprep.subr.mxu0 0.0
    %818 = vmatpush1.msra.mxu0 0.0
    %819 = vmatprep.subr.mxu0 0.0
    %820 = vmatpush1.msra.mxu0 0.0
    %821 = vmatprep.subr.mxu0 0.0
    %822 = vmatpush1.msra.mxu0 0.0
    %823 = vmatprep.subr.mxu0 0.0
    %824 = vmatpush1.msra.mxu0 0.0
    %825 = vmatprep.subr.mxu0 0.0
    %826 = vmatpush1.msra.mxu0 0.0
    %827 = vmatprep.subr.mxu0 0.0
    %828 = vmatpush1.msra.mxu0 0.0
    %829 = vmatprep.subr.mxu0 0.0
    %830 = vmatpush1.msra.mxu0 0.0
    %831 = vmatprep.subr.mxu0 0.0
    %832 = vmatpush1.msra.mxu0 0.0
    %833 = vmatprep.subr.mxu0 0.0
    %834 = vmatpush1.msra.mxu0 0.0
    %835 = vmatprep.subr.mxu0 0.0
    %836 = vmatpush1.msra.mxu0 0.0
    %837 = vmatprep.subr.mxu0 0.0
    %838 = vmatpush1.msra.mxu0 0.0
    %839 = vmatprep.subr.mxu0 0.0
    %840 = vmatpush1.msra.mxu0 0.0
    %841 = vmatprep.subr.mxu0 0.0
    %842 = vmatpush1.msra.mxu0 0.0
    %843 = vmatprep.subr.mxu0 0.0
    %844 = vmatpush1.msra.mxu0 0.0
    %845 = vmatprep.mubr.f32.mxu0 0.0
    %846 = vmatmul.mubr.f32.gmra.mrb[0].mxu0 %v779
    %v847 = vpop.f32.mrb[0].mxu0
    %v848 = vadd.f32 0.0, %v847
    %v849 = vpop.f32.mrb[0].mxu0
    %850 = vdwg.mxu0
    %v851 = vadd.f32 %v778, %v848
    %v852 = vxor.u32 %v851, 2147483648
    %v853 = vmul.f32 %v852, 1.442695
    %v854 = vpow.pop %v853
    %v855 = vadd.f32 %v854, 1.0
    %v856 = vrcp.pop %v855
    %v857 = vmul.f32 1.0, %v856
    %v858 = vtanh.pop %v851
    %v859 = vmul.f32 %v857, %v764
    %861 = vrot.lane.b32.xlu0 %v858, 64
    %v862 = vpop.permute.xlu0 %861
    %v864 = vmul.f32 %v857, %v862
    %866 = vrot.lane.b32.xlu0 %v864, 32
    %v867 = vpop.permute.xlu0 %866
    %v869 = vadd.f32 %v859, %v867
    %v870 = vtanh.pop %v869
    %872 = vrot.lane.b32.xlu0 %v870, 64
    %v873 = vpop.permute.xlu0 %872
    %v875 = vmul.f32 %v857, %v873
    %877 = vrot.lane.b32.xlu0 %v875, 32
    %v878 = vpop.permute.xlu0 %877
    %s880 = scalar_lea.vmem %s4, 14
    %881 = vst.msk [vmem:[%s880] sm:$0x3] %vm145, %v878
    %882 = vst.msk [vmem:[#allocation2] sm:$0x3] %vm145, %v878
    %884 = vrot.lane.b32.xlu0 %v869, 96
    %v885 = vpop.permute.xlu0 %884
    %887 = vst.msk [vmem:[#allocation3] sm:$0x3] %vm145, %v885
    // Predicated region
    $region22: #{actor_network_forward.2} parent=1 // pred_check
      %p888 = pneg %p22
    $region23: #{actor_network_forward.2} parent=1 // pred_check_branch
      %890 = sbr.rel (%p888) target = $region25
    $region24: #{actor_network_forward.2} parent=1 // pred_region
      %891 = vst.msk [vmem:[#allocation4] sm:$0x3] %vm145, %v878
      %892 = vst.msk [vmem:[#allocation6] sm:$0x3] %vm145, %v885
    $region25: #{actor_network_forward.2} parent=1 // pred_fallthru
      _
    // Predicated region
    $region26: #{actor_network_forward.2} parent=1 // pred_check
      _
    $region27: #{actor_network_forward.2} parent=1 // pred_check_branch
      %894 = sbr.rel (0) target = $region29
    $region28: #{actor_network_forward.2} parent=1 // pred_region
      _
    $region29: #{actor_network_forward.2} parent=1 // pred_fallthru
      _
    // Predicated region
    $region30: #{actor_network_forward.2} parent=1 // pred_check
      _
    $region31: #{actor_network_forward.2} parent=1 // pred_check_branch
      %896 = sbr.rel (0) target = $region33
    $region32: #{actor_network_forward.2} parent=1 // pred_region
      %s898 = ssub.s32 32, 32
      %899 = vsyncadd [#allocation5], %s898
      %s901 = sshll.u32 [#allocation4], 4
      %s902 = int_to_ptr.vmem [resolvable:$true] %s901
      %904 = dma.vmem_to_hbm [thread:$0]  %s902, 32, %s5, [#allocation5]
    $region33: #{actor_network_forward.2} parent=1 // pred_fallthru
      _
    // Predicated region
    $region34: #{actor_network_forward.2} parent=1 // pred_check
      _
    $region35: #{actor_network_forward.2} parent=1 // pred_check_branch
      %906 = sbr.rel (0) target = $region37
    $region36: #{actor_network_forward.2} parent=1 // pred_region
      %s908 = ssub.s32 32, 32
      %909 = vsyncadd [#allocation7], %s908
      %s911 = sshll.u32 [#allocation6], 4
      %s912 = int_to_ptr.vmem [resolvable:$true] %s911
      %914 = dma.vmem_to_hbm [thread:$0]  %s912, 32, %s6, [#allocation7]
    $region37: #{actor_network_forward.2} parent=1 // pred_fallthru
      _
    // Predicated region
    $region38: #{actor_network_forward.2} parent=1 // pred_check
      _
    $region39: #{actor_network_forward.2} parent=1 // pred_check_branch
      %916 = sbr.rel (0) target = $region41
    $region40: #{actor_network_forward.2} parent=1 // pred_region
      _
    $region41: #{actor_network_forward.2} parent=1 // pred_fallthru
      _
    // Predicated region
    $region42: #{actor_network_forward.2} parent=1 // pred_check
      _
    $region43: #{actor_network_forward.2} parent=1 // pred_check_branch
      %918 = sbr.rel (0) target = $region45
    $region44: #{actor_network_forward.2} parent=1 // pred_region
      %919 = dma.done [#allocation5], 32
    $region45: #{actor_network_forward.2} parent=1 // pred_fallthru
      _
    // Predicated region
    $region46: #{actor_network_forward.2} parent=1 // pred_check
      _
    $region47: #{actor_network_forward.2} parent=1 // pred_check_branch
      %921 = sbr.rel (0) target = $region49
    $region48: #{actor_network_forward.2} parent=1 // pred_region
      %922 = dma.done [#allocation7], 32
    $region49: #{actor_network_forward.2} parent=1 // pred_fallthru
      _
    %923 = vsyncpa [#allocation5], 1
    %924 = vsyncpa [#allocation7], 1

</llo_original>
